<compile_context>
chip_gen: v7x
topology: tpu7x:2x2x1
jax: 0.10.0
libtpu: 0.0.40
codegen_flags: <defaults>
</compile_context>

<pallas_src>
import jax
import jax.numpy as jnp
import numpy as np
from jax.experimental import pallas as pl
from jax.experimental.pallas import tpu as pltpu

BN_EPS = 1e-5
K = 3                      # conv kernel size
MATMUL_DTYPE = jnp.float32  # set to jnp.bfloat16 on v6e/v7x after re-validating


def _round_up(n, m):
    return ((n + m - 1) // m) * m


def _bn_train(x, gamma, beta):
    # torch BatchNorm1d train mode: batch mean, biased variance, eps=1e-5.
    mean = jnp.mean(x, axis=0, keepdims=True)
    var = jnp.mean(jnp.square(x - mean), axis=0, keepdims=True)
    return (x - mean) * jax.lax.rsqrt(var + BN_EPS) * gamma + beta


# ----------------------------------------------------------------------------
# Parameter packing: everything into ONE (rows, 128) f32 slab (done once).
# ----------------------------------------------------------------------------
def pack_params(params):
    """Returns (slab, layout); layout maps name -> (row_offset, rows, cols).

    Each parameter block starts at an 8-row-aligned offset so in-kernel static
    slices stay sublane-aligned. Classifier and projection-layer-1 weights /
    biases are fused (they share LHS h inside the kernel).
    """
    wcp1 = jnp.concatenate([params["w1"], params["wc"]], axis=1)
    bcp1 = jnp.concatenate([params["b1"], params["bc"]], axis=1)
    entries = [
        ("wconv", params["conv_w"]), ("bconv", params["conv_b"]),
        ("wcp1", wcp1), ("bcp1", bcp1),
        ("g1", params["g1"]), ("be1", params["be1"]),
        ("w2", params["w2"]), ("b2", params["b2"]),
        ("g2", params["g2"]), ("be2", params["be2"]),
        ("w3", params["w3"]), ("b3", params["b3"]),
        ("g3", params["g3"]), ("be3", params["be3"]),
        ("wp1", params["wp1"]), ("bp1", params["bp1"]),
        ("gp1", params["gp1"]), ("bep1", params["bep1"]),
        ("wp2", params["wp2"]), ("bp2", params["bp2"]),
    ]
    layout, blocks, off = {}, [], 0
    for name, arr in entries:
        arr = jnp.asarray(arr, jnp.float32)
        r, c = arr.shape
        assert c <= 128, f"{name}: last dim {c} exceeds 128 lanes"
        rp = (-r) % 8
        blocks.append(jnp.pad(arr, ((0, rp), (0, 128 - c))))
        layout[name] = (off, r, c)
        off += r + rp
    slab = jnp.concatenate(blocks, axis=0)
    # conv weight: expose its full 8-aligned row block so the im2col LHS can be
    # lane-padded to the same contraction width (padding rows are zero => no-op).
    o, r, c = layout["wconv"]
    layout["wconv"] = (o, _round_up(r, 8), c)
    return slab, layout


# ----------------------------------------------------------------------------
# Fused kernel: conv(im2col matmul) + ReLU + GAP + classifier + proj MLP + pred MLP
# ----------------------------------------------------------------------------
def _make_kernel(layout, B, img_rows, hw, feat, hidden, proj_out, ncls, out_w):
    n_rows = B * img_rows

    def kernel(x_ref, slab_ref, out_ref):
        def par(name):
            r, nr, ncol = layout[name]
            return slab_ref[r:r + nr, 0:ncol]

        def mdot(a, b):
            return jnp.dot(a.astype(MATMUL_DTYPE), b.astype(MATMUL_DTYPE),
                           preferred_element_type=jnp.float32)

        # ----- encoder: single fused-K im2col conv matmul + bias + ReLU
        a = jnp.maximum(mdot(x_ref[...], par("wconv")) + par("bconv"), 0.0)

        # ----- global average pool (mask alignment-padding rows, reshape + sum)
        if img_rows != hw:  # only when per-image rows were padded up to x8
            ridx = jax.lax.broadcasted_iota(jnp.int32, (n_rows, 1), 0)
            a = jnp.where((ridx % img_rows) < hw, a, 0.0)
        h = jnp.sum(a.reshape(B, img_rows, feat), axis=1) * (1.0 / hw)  # (B, feat)

        # ----- classifier + projection layer 1 (shared LHS h, fused weights)
        t0 = mdot(h, par("wcp1")) + par("bcp1")
        y = t0[:, hidden:hidden + ncls]
        a1 = jnp.maximum(_bn_train(t0[:, :hidden], par("g1"), par("be1")), 0.0)

        # ----- projection layers 2 & 3
        a2 = jnp.maximum(_bn_train(mdot(a1, par("w2")) + par("b2"),
                                   par("g2"), par("be2")), 0.0)
        z = _bn_train(mdot(a2, par("w3")) + par("b3"), par("g3"), par("be3"))

        # ----- prediction MLP
        q = jnp.maximum(_bn_train(mdot(z, par("wp1")) + par("bp1"),
                                  par("gp1"), par("bep1")), 0.0)
        p = mdot(q, par("wp2")) + par("bp2")

        # ----- single unmasked lane-dense output store: [z | p | y | 0-pad]
        parts = [z, p, y]
        pad_w = out_w - (2 * proj_out + ncls)
        if pad_w:
            parts.append(jnp.zeros((B, pad_w), jnp.float32))
        out_ref[...] = jnp.concatenate(parts, axis=-1)

    return kernel


def make_forward(layout):
    """Build a jitted forward(x, slab) for a given packed-parameter layout."""
    feat = layout["wconv"][2]
    kc_pad = layout["wconv"][1]
    hidden = layout["g1"][2]
    ncls = layout["wcp1"][2] - hidden
    proj_out = layout["w3"][2]
    out_w = _round_up(2 * proj_out + ncls, 128)

    @jax.jit
    def forward(x, slab):
        B, cin, H, W = x.shape
        kc = K * K * cin
        assert kc <= kc_pad, "packed conv weight too small for this input"
        hw = H * W
        img_rows = _round_up(hw, 8)
        n_rows = B * img_rows

        # Wrapper-side im2col (read once by the kernel as one aligned array):
        # 9 shifted taps concatenated along lanes, feature order (kh, kw, cin)
        # matching the flattened conv_w row order.
        xn = jnp.transpose(x, (0, 2, 3, 1))                  # NCHW -> NHWC
        xp = jnp.pad(xn, ((0, 0), (1, 1), (1, 1), (0, 0)))   # "same" spatial pad
        taps = [xp[:, kh:kh + H, kw:kw + W, :]
                for kh in range(K) for kw in range(K)]
        patches = jnp.concatenate(taps, axis=-1).reshape(B, hw, kc)
        patches = jnp.pad(patches,
                          ((0, 0), (0, img_rows - hw), (0, kc_pad - kc)))
        x_cols = patches.reshape(n_rows, kc_pad)

        kernel = _make_kernel(layout, B, img_rows, hw, feat, hidden,
                              proj_out, ncls, out_w)
        vmem = pl.BlockSpec(memory_space=pltpu.MemorySpace.VMEM)
        # No grid: a single un-pipelined step (nothing to double-buffer).
        # For scaled-up shapes: add a leading "parallel" row-tile grid axis
        # (2-way on v7x) and size the tile to the chip's scoped VMEM limit.
        packed = pl.pallas_call(
            kernel,
            out_shape=jax.ShapeDtypeStruct((B, out_w), jnp.float32),
            in_specs=[vmem, vmem],
            out_specs=vmem,
        )(x_cols, slab)

        z = packed[:, :proj_out]
        p = packed[:, proj_out:2 * proj_out]
        y = packed[:, 2 * proj_out:2 * proj_out + ncls]
        return z, p, y

    return forward


# ----------------------------------------------------------------------------
# Deterministic parameter init (PyTorch-style uniform(-1/sqrt(fan_in), ...))
# ----------------------------------------------------------------------------
def init_params(key, cin=4, feat=32, proj_hidden=32, proj_out=16,
                pred_hidden=16, num_classes=10, k=3):
    keys = jax.random.split(key, 8)

    def lin(kk, fan_in, fan_out):
        bound = 1.0 / float(np.sqrt(fan_in))
        kw, kb = jax.random.split(kk)
        w = jax.random.uniform(kw, (fan_in, fan_out), jnp.float32, -bound, bound)
        b = jax.random.uniform(kb, (1, fan_out), jnp.float32, -bound, bound)
        return w, b

    p = {}
    # conv weight stored pre-flattened as (K*K*Cin, feat), feature order (kh, kw, cin)
    p["conv_w"], p["conv_b"] = lin(keys[0], k * k * cin, feat)
    # classifier
    p["wc"], p["bc"] = lin(keys[1], feat, num_classes)
    # projection MLP
    p["w1"], p["b1"] = lin(keys[2], feat, proj_hidden)
    p["g1"], p["be1"] = jnp.ones((1, proj_hidden)), jnp.zeros((1, proj_hidden))
    p["w2"], p["b2"] = lin(keys[3], proj_hidden, proj_hidden)
    p["g2"], p["be2"] = jnp.ones((1, proj_hidden)), jnp.zeros((1, proj_hidden))
    p["w3"], p["b3"] = lin(keys[4], proj_hidden, proj_out)
    p["g3"], p["be3"] = jnp.ones((1, proj_out)), jnp.zeros((1, proj_out))
    # prediction MLP
    p["wp1"], p["bp1"] = lin(keys[5], proj_out, pred_hidden)
    p["gp1"], p["bep1"] = jnp.ones((1, pred_hidden)), jnp.zeros((1, pred_hidden))
    p["wp2"], p["bp2"] = lin(keys[6], pred_hidden, proj_out)
    return p


# ----------------------------------------------------------------------------
# Pure-JAX reference (same math) for a correctness sanity check
# ----------------------------------------------------------------------------
def _reference_forward(x, params):
    hi = jax.lax.Precision.HIGHEST
    B, Cin, H, W = x.shape
    xn = jnp.transpose(x, (0, 2, 3, 1))
    xp = jnp.pad(xn, ((0, 0), (1, 1), (1, 1), (0, 0)))
    cols = [xp[:, kh:kh + H, kw:kw + W, :] for kh in range(K) for kw in range(K)]
    patches = jnp.concatenate(cols, axis=-1).reshape(B * H * W, K * K * Cin)
    a = jnp.maximum(jnp.dot(patches, params["conv_w"], precision=hi) + params["conv_b"], 0.0)
    h = jnp.mean(a.reshape(B, H * W, -1), axis=1)

    def bn(v, g, b):
        m = jnp.mean(v, axis=0, keepdims=True)
        var = jnp.mean((v - m) ** 2, axis=0, keepdims=True)
        return (v - m) / jnp.sqrt(var + BN_EPS) * g + b

    y = jnp.dot(h, params["wc"], precision=hi) + params["bc"]
    t = jnp.maximum(bn(jnp.dot(h, params["w1"], precision=hi) + params["b1"],
                       params["g1"], params["be1"]), 0.0)
    t = jnp.maximum(bn(jnp.dot(t, params["w2"], precision=hi) + params["b2"],
                       params["g2"], params["be2"]), 0.0)
    z = bn(jnp.dot(t, params["w3"], precision=hi) + params["b3"], params["g3"], params["be3"])
    q = jnp.maximum(bn(jnp.dot(z, params["wp1"], precision=hi) + params["bp1"],
                       params["gp1"], params["bep1"]), 0.0)
    pp = jnp.dot(q, params["wp2"], precision=hi) + params["bp2"]
    return z, pp, y


if __name__ == "__main__":
    key = jax.random.PRNGKey(0)
    kx, kp = jax.random.split(key)

    B, Cin, H, W = 2, 4, 16, 16
    x = jax.random.normal(kx, (B, Cin, H, W), dtype=jnp.float32)
    params = init_params(kp, cin=Cin, feat=32, proj_hidden=32, proj_out=16,
                         pred_hidden=16, num_classes=10)

    slab, layout = pack_params(params)      # packed ONCE per parameter set
    forward = make_forward(layout)

    z, p, y = forward(x, slab)
    jax.block_until_ready((z, p, y))

    z_r, p_r, y_r = _reference_forward(x, params)
    np.testing.assert_allclose(np.asarray(z), np.asarray(z_r), rtol=1e-2, atol=1e-2)
    np.testing.assert_allclose(np.asarray(p), np.asarray(p_r), rtol=1e-2, atol=1e-2)
    np.testing.assert_allclose(np.asarray(y), np.asarray(y_r), rtol=1e-2, atol=1e-2)

    assert z.shape == (B, 16) and p.shape == (B, 16) and y.shape == (B, 10)
    print("KERNEL_OK")
</pallas_src>

<mosaic_0001>
module attributes {stable_mosaic.version = 11 : i64} {
  func.func @kernel(%arg0: memref<512x40xf32, #tpu.memory_space<vmem>>, %arg1: memref<280x128xf32, #tpu.memory_space<vmem>>, %arg2: memref<2x128xf32, #tpu.memory_space<vmem>>) attributes {dimension_semantics = [], scalar_prefetch = 0 : i64, scratch_operands = 0 : i64, tpu.core_type = #tpu.core_type<tc>} {
    %c0 = arith.constant 0 : index
    %c0_0 = arith.constant 0 : index
    %0 = vector.load %arg0[%c0, %c0_0] : memref<512x40xf32, #tpu.memory_space<vmem>>, vector<512x40xf32>
    %c0_1 = arith.constant 0 : index
    %c0_2 = arith.constant 0 : index
    %1 = vector.load %arg1[%c0_1, %c0_2] : memref<280x128xf32, #tpu.memory_space<vmem>>, vector<40x32xf32>
    %cst = arith.constant dense<0.000000e+00> : vector<512x32xf32>
    %2 = tpu.matmul %0, %1, %cst {dimension_numbers = #tpu.dot_dimension_numbers<[1], [0], [0], [1], [0, 0, 1, 1], [], []>} : vector<512x40xf32>, vector<40x32xf32>, vector<512x32xf32> -> vector<512x32xf32>
    %c40 = arith.constant 40 : index
    %c0_3 = arith.constant 0 : index
    %3 = vector.load %arg1[%c40, %c0_3] : memref<280x128xf32, #tpu.memory_space<vmem>>, vector<1x32xf32>
    %4 = vector.broadcast %3 : vector<1x32xf32> to vector<512x32xf32>
    %5 = arith.addf %2, %4 : vector<512x32xf32>
    %cst_4 = arith.constant 0.000000e+00 : f32
    %6 = vector.broadcast %cst_4 : f32 to vector<512x32xf32>
    %7 = arith.maximumf %5, %6 : vector<512x32xf32>
    %8 = vector.shape_cast %7 : vector<512x32xf32> to vector<2x256x32xf32>
    %cst_5 = arith.constant dense<0.000000e+00> : vector<2x32xf32>
    %9 = vector.multi_reduction <add>, %8, %cst_5 [1] : vector<2x256x32xf32> to vector<2x32xf32>
    %cst_6 = arith.constant 3.906250e-03 : f32
    %10 = vector.broadcast %cst_6 : f32 to vector<2x32xf32>
    %11 = arith.mulf %9, %10 : vector<2x32xf32>
    %c48 = arith.constant 48 : index
    %c0_7 = arith.constant 0 : index
    %12 = vector.load %arg1[%c48, %c0_7] : memref<280x128xf32, #tpu.memory_space<vmem>>, vector<32x42xf32>
    %cst_8 = arith.constant dense<0.000000e+00> : vector<2x42xf32>
    %13 = tpu.matmul %11, %12, %cst_8 {dimension_numbers = #tpu.dot_dimension_numbers<[1], [0], [0], [1], [0, 0, 1, 1], [], []>} : vector<2x32xf32>, vector<32x42xf32>, vector<2x42xf32> -> vector<2x42xf32>
    %c80 = arith.constant 80 : index
    %c0_9 = arith.constant 0 : index
    %14 = vector.load %arg1[%c80, %c0_9] : memref<280x128xf32, #tpu.memory_space<vmem>>, vector<1x42xf32>
    %15 = vector.broadcast %14 : vector<1x42xf32> to vector<2x42xf32>
    %16 = arith.addf %13, %15 : vector<2x42xf32>
    %17 = vector.extract_strided_slice %16 {offsets = [0, 32], sizes = [2, 10], strides = [1, 1]} : vector<2x42xf32> to vector<2x10xf32>
    %18 = vector.extract_strided_slice %16 {offsets = [0, 0], sizes = [2, 32], strides = [1, 1]} : vector<2x42xf32> to vector<2x32xf32>
    %c88 = arith.constant 88 : index
    %c0_10 = arith.constant 0 : index
    %19 = vector.load %arg1[%c88, %c0_10] : memref<280x128xf32, #tpu.memory_space<vmem>>, vector<1x32xf32>
    %c96 = arith.constant 96 : index
    %c0_11 = arith.constant 0 : index
    %20 = vector.load %arg1[%c96, %c0_11] : memref<280x128xf32, #tpu.memory_space<vmem>>, vector<1x32xf32>
    %cst_12 = arith.constant dense<0.000000e+00> : vector<32xf32>
    %21 = vector.multi_reduction <add>, %18, %cst_12 [0] : vector<2x32xf32> to vector<32xf32>
    %22 = vector.shape_cast %21 : vector<32xf32> to vector<1x32xf32>
    %cst_13 = arith.constant 2.000000e+00 : f32
    %23 = vector.broadcast %cst_13 : f32 to vector<1x32xf32>
    %24 = arith.divf %22, %23 : vector<1x32xf32>
    %25 = vector.broadcast %24 : vector<1x32xf32> to vector<2x32xf32>
    %26 = arith.subf %18, %25 : vector<2x32xf32>
    %27 = arith.mulf %26, %26 : vector<2x32xf32>
    %cst_14 = arith.constant dense<0.000000e+00> : vector<32xf32>
    %28 = vector.multi_reduction <add>, %27, %cst_14 [0] : vector<2x32xf32> to vector<32xf32>
    %29 = vector.shape_cast %28 : vector<32xf32> to vector<1x32xf32>
    %cst_15 = arith.constant 2.000000e+00 : f32
    %30 = vector.broadcast %cst_15 : f32 to vector<1x32xf32>
    %31 = arith.divf %29, %30 : vector<1x32xf32>
    %32 = vector.broadcast %24 : vector<1x32xf32> to vector<2x32xf32>
    %33 = arith.subf %18, %32 : vector<2x32xf32>
    %cst_16 = arith.constant 9.99999974E-6 : f32
    %34 = vector.broadcast %cst_16 : f32 to vector<1x32xf32>
    %35 = arith.addf %31, %34 : vector<1x32xf32>
    %36 = math.rsqrt %35 : vector<1x32xf32>
    %37 = vector.broadcast %36 : vector<1x32xf32> to vector<2x32xf32>
    %38 = arith.mulf %33, %37 : vector<2x32xf32>
    %39 = vector.broadcast %19 : vector<1x32xf32> to vector<2x32xf32>
    %40 = arith.mulf %38, %39 : vector<2x32xf32>
    %41 = vector.broadcast %20 : vector<1x32xf32> to vector<2x32xf32>
    %42 = arith.addf %40, %41 : vector<2x32xf32>
    %cst_17 = arith.constant 0.000000e+00 : f32
    %43 = vector.broadcast %cst_17 : f32 to vector<2x32xf32>
    %44 = arith.maximumf %42, %43 : vector<2x32xf32>
    %c104 = arith.constant 104 : index
    %c0_18 = arith.constant 0 : index
    %45 = vector.load %arg1[%c104, %c0_18] : memref<280x128xf32, #tpu.memory_space<vmem>>, vector<32x32xf32>
    %cst_19 = arith.constant dense<0.000000e+00> : vector<2x32xf32>
    %46 = tpu.matmul %44, %45, %cst_19 {dimension_numbers = #tpu.dot_dimension_numbers<[1], [0], [0], [1], [0, 0, 1, 1], [], []>} : vector<2x32xf32>, vector<32x32xf32>, vector<2x32xf32> -> vector<2x32xf32>
    %c136 = arith.constant 136 : index
    %c0_20 = arith.constant 0 : index
    %47 = vector.load %arg1[%c136, %c0_20] : memref<280x128xf32, #tpu.memory_space<vmem>>, vector<1x32xf32>
    %48 = vector.broadcast %47 : vector<1x32xf32> to vector<2x32xf32>
    %49 = arith.addf %46, %48 : vector<2x32xf32>
    %c144 = arith.constant 144 : index
    %c0_21 = arith.constant 0 : index
    %50 = vector.load %arg1[%c144, %c0_21] : memref<280x128xf32, #tpu.memory_space<vmem>>, vector<1x32xf32>
    %c152 = arith.constant 152 : index
    %c0_22 = arith.constant 0 : index
    %51 = vector.load %arg1[%c152, %c0_22] : memref<280x128xf32, #tpu.memory_space<vmem>>, vector<1x32xf32>
    %cst_23 = arith.constant dense<0.000000e+00> : vector<32xf32>
    %52 = vector.multi_reduction <add>, %49, %cst_23 [0] : vector<2x32xf32> to vector<32xf32>
    %53 = vector.shape_cast %52 : vector<32xf32> to vector<1x32xf32>
    %cst_24 = arith.constant 2.000000e+00 : f32
    %54 = vector.broadcast %cst_24 : f32 to vector<1x32xf32>
    %55 = arith.divf %53, %54 : vector<1x32xf32>
    %56 = vector.broadcast %55 : vector<1x32xf32> to vector<2x32xf32>
    %57 = arith.subf %49, %56 : vector<2x32xf32>
    %58 = arith.mulf %57, %57 : vector<2x32xf32>
    %cst_25 = arith.constant dense<0.000000e+00> : vector<32xf32>
    %59 = vector.multi_reduction <add>, %58, %cst_25 [0] : vector<2x32xf32> to vector<32xf32>
    %60 = vector.shape_cast %59 : vector<32xf32> to vector<1x32xf32>
    %cst_26 = arith.constant 2.000000e+00 : f32
    %61 = vector.broadcast %cst_26 : f32 to vector<1x32xf32>
    %62 = arith.divf %60, %61 : vector<1x32xf32>
    %63 = vector.broadcast %55 : vector<1x32xf32> to vector<2x32xf32>
    %64 = arith.subf %49, %63 : vector<2x32xf32>
    %cst_27 = arith.constant 9.99999974E-6 : f32
    %65 = vector.broadcast %cst_27 : f32 to vector<1x32xf32>
    %66 = arith.addf %62, %65 : vector<1x32xf32>
    %67 = math.rsqrt %66 : vector<1x32xf32>
    %68 = vector.broadcast %67 : vector<1x32xf32> to vector<2x32xf32>
    %69 = arith.mulf %64, %68 : vector<2x32xf32>
    %70 = vector.broadcast %50 : vector<1x32xf32> to vector<2x32xf32>
    %71 = arith.mulf %69, %70 : vector<2x32xf32>
    %72 = vector.broadcast %51 : vector<1x32xf32> to vector<2x32xf32>
    %73 = arith.addf %71, %72 : vector<2x32xf32>
    %cst_28 = arith.constant 0.000000e+00 : f32
    %74 = vector.broadcast %cst_28 : f32 to vector<2x32xf32>
    %75 = arith.maximumf %73, %74 : vector<2x32xf32>
    %c160 = arith.constant 160 : index
    %c0_29 = arith.constant 0 : index
    %76 = vector.load %arg1[%c160, %c0_29] : memref<280x128xf32, #tpu.memory_space<vmem>>, vector<32x16xf32>
    %cst_30 = arith.constant dense<0.000000e+00> : vector<2x16xf32>
    %77 = tpu.matmul %75, %76, %cst_30 {dimension_numbers = #tpu.dot_dimension_numbers<[1], [0], [0], [1], [0, 0, 1, 1], [], []>} : vector<2x32xf32>, vector<32x16xf32>, vector<2x16xf32> -> vector<2x16xf32>
    %c192 = arith.constant 192 : index
    %c0_31 = arith.constant 0 : index
    %78 = vector.load %arg1[%c192, %c0_31] : memref<280x128xf32, #tpu.memory_space<vmem>>, vector<1x16xf32>
    %79 = vector.broadcast %78 : vector<1x16xf32> to vector<2x16xf32>
    %80 = arith.addf %77, %79 : vector<2x16xf32>
    %c200 = arith.constant 200 : index
    %c0_32 = arith.constant 0 : index
    %81 = vector.load %arg1[%c200, %c0_32] : memref<280x128xf32, #tpu.memory_space<vmem>>, vector<1x16xf32>
    %c208 = arith.constant 208 : index
    %c0_33 = arith.constant 0 : index
    %82 = vector.load %arg1[%c208, %c0_33] : memref<280x128xf32, #tpu.memory_space<vmem>>, vector<1x16xf32>
    %cst_34 = arith.constant dense<0.000000e+00> : vector<16xf32>
    %83 = vector.multi_reduction <add>, %80, %cst_34 [0] : vector<2x16xf32> to vector<16xf32>
    %84 = vector.shape_cast %83 : vector<16xf32> to vector<1x16xf32>
    %cst_35 = arith.constant 2.000000e+00 : f32
    %85 = vector.broadcast %cst_35 : f32 to vector<1x16xf32>
    %86 = arith.divf %84, %85 : vector<1x16xf32>
    %87 = vector.broadcast %86 : vector<1x16xf32> to vector<2x16xf32>
    %88 = arith.subf %80, %87 : vector<2x16xf32>
    %89 = arith.mulf %88, %88 : vector<2x16xf32>
    %cst_36 = arith.constant dense<0.000000e+00> : vector<16xf32>
    %90 = vector.multi_reduction <add>, %89, %cst_36 [0] : vector<2x16xf32> to vector<16xf32>
    %91 = vector.shape_cast %90 : vector<16xf32> to vector<1x16xf32>
    %cst_37 = arith.constant 2.000000e+00 : f32
    %92 = vector.broadcast %cst_37 : f32 to vector<1x16xf32>
    %93 = arith.divf %91, %92 : vector<1x16xf32>
    %94 = vector.broadcast %86 : vector<1x16xf32> to vector<2x16xf32>
    %95 = arith.subf %80, %94 : vector<2x16xf32>
    %cst_38 = arith.constant 9.99999974E-6 : f32
    %96 = vector.broadcast %cst_38 : f32 to vector<1x16xf32>
    %97 = arith.addf %93, %96 : vector<1x16xf32>
    %98 = math.rsqrt %97 : vector<1x16xf32>
    %99 = vector.broadcast %98 : vector<1x16xf32> to vector<2x16xf32>
    %100 = arith.mulf %95, %99 : vector<2x16xf32>
    %101 = vector.broadcast %81 : vector<1x16xf32> to vector<2x16xf32>
    %102 = arith.mulf %100, %101 : vector<2x16xf32>
    %103 = vector.broadcast %82 : vector<1x16xf32> to vector<2x16xf32>
    %104 = arith.addf %102, %103 : vector<2x16xf32>
    %c216 = arith.constant 216 : index
    %c0_39 = arith.constant 0 : index
    %105 = vector.load %arg1[%c216, %c0_39] : memref<280x128xf32, #tpu.memory_space<vmem>>, vector<16x16xf32>
    %cst_40 = arith.constant dense<0.000000e+00> : vector<2x16xf32>
    %106 = tpu.matmul %104, %105, %cst_40 {dimension_numbers = #tpu.dot_dimension_numbers<[1], [0], [0], [1], [0, 0, 1, 1], [], []>} : vector<2x16xf32>, vector<16x16xf32>, vector<2x16xf32> -> vector<2x16xf32>
    %c232 = arith.constant 232 : index
    %c0_41 = arith.constant 0 : index
    %107 = vector.load %arg1[%c232, %c0_41] : memref<280x128xf32, #tpu.memory_space<vmem>>, vector<1x16xf32>
    %108 = vector.broadcast %107 : vector<1x16xf32> to vector<2x16xf32>
    %109 = arith.addf %106, %108 : vector<2x16xf32>
    %c240 = arith.constant 240 : index
    %c0_42 = arith.constant 0 : index
    %110 = vector.load %arg1[%c240, %c0_42] : memref<280x128xf32, #tpu.memory_space<vmem>>, vector<1x16xf32>
    %c248 = arith.constant 248 : index
    %c0_43 = arith.constant 0 : index
    %111 = vector.load %arg1[%c248, %c0_43] : memref<280x128xf32, #tpu.memory_space<vmem>>, vector<1x16xf32>
    %cst_44 = arith.constant dense<0.000000e+00> : vector<16xf32>
    %112 = vector.multi_reduction <add>, %109, %cst_44 [0] : vector<2x16xf32> to vector<16xf32>
    %113 = vector.shape_cast %112 : vector<16xf32> to vector<1x16xf32>
    %cst_45 = arith.constant 2.000000e+00 : f32
    %114 = vector.broadcast %cst_45 : f32 to vector<1x16xf32>
    %115 = arith.divf %113, %114 : vector<1x16xf32>
    %116 = vector.broadcast %115 : vector<1x16xf32> to vector<2x16xf32>
    %117 = arith.subf %109, %116 : vector<2x16xf32>
    %118 = arith.mulf %117, %117 : vector<2x16xf32>
    %cst_46 = arith.constant dense<0.000000e+00> : vector<16xf32>
    %119 = vector.multi_reduction <add>, %118, %cst_46 [0] : vector<2x16xf32> to vector<16xf32>
    %120 = vector.shape_cast %119 : vector<16xf32> to vector<1x16xf32>
    %cst_47 = arith.constant 2.000000e+00 : f32
    %121 = vector.broadcast %cst_47 : f32 to vector<1x16xf32>
    %122 = arith.divf %120, %121 : vector<1x16xf32>
    %123 = vector.broadcast %115 : vector<1x16xf32> to vector<2x16xf32>
    %124 = arith.subf %109, %123 : vector<2x16xf32>
    %cst_48 = arith.constant 9.99999974E-6 : f32
    %125 = vector.broadcast %cst_48 : f32 to vector<1x16xf32>
    %126 = arith.addf %122, %125 : vector<1x16xf32>
    %127 = math.rsqrt %126 : vector<1x16xf32>
    %128 = vector.broadcast %127 : vector<1x16xf32> to vector<2x16xf32>
    %129 = arith.mulf %124, %128 : vector<2x16xf32>
    %130 = vector.broadcast %110 : vector<1x16xf32> to vector<2x16xf32>
    %131 = arith.mulf %129, %130 : vector<2x16xf32>
    %132 = vector.broadcast %111 : vector<1x16xf32> to vector<2x16xf32>
    %133 = arith.addf %131, %132 : vector<2x16xf32>
    %cst_49 = arith.constant 0.000000e+00 : f32
    %134 = vector.broadcast %cst_49 : f32 to vector<2x16xf32>
    %135 = arith.maximumf %133, %134 : vector<2x16xf32>
    %c256 = arith.constant 256 : index
    %c0_50 = arith.constant 0 : index
    %136 = vector.load %arg1[%c256, %c0_50] : memref<280x128xf32, #tpu.memory_space<vmem>>, vector<16x16xf32>
    %cst_51 = arith.constant dense<0.000000e+00> : vector<2x16xf32>
    %137 = tpu.matmul %135, %136, %cst_51 {dimension_numbers = #tpu.dot_dimension_numbers<[1], [0], [0], [1], [0, 0, 1, 1], [], []>} : vector<2x16xf32>, vector<16x16xf32>, vector<2x16xf32> -> vector<2x16xf32>
    %c272 = arith.constant 272 : index
    %c0_52 = arith.constant 0 : index
    %138 = vector.load %arg1[%c272, %c0_52] : memref<280x128xf32, #tpu.memory_space<vmem>>, vector<1x16xf32>
    %139 = vector.broadcast %138 : vector<1x16xf32> to vector<2x16xf32>
    %140 = arith.addf %137, %139 : vector<2x16xf32>
    %cst_53 = arith.constant 0.000000e+00 : f32
    %141 = vector.broadcast %cst_53 : f32 to vector<2x86xf32>
    %142 = tpu.concatenate %104, %140, %17, %141 in 1 : vector<2x16xf32>, vector<2x16xf32>, vector<2x10xf32>, vector<2x86xf32> -> vector<2x128xf32>
    %c0_54 = arith.constant 0 : index
    %c0_55 = arith.constant 0 : index
    %143 = vector.load %arg2[%c0_54, %c0_55] : memref<2x128xf32, #tpu.memory_space<vmem>>, vector<2x128xf32>
    tpu.vector_store %arg2[%c0_54, %c0_55], %142 {strides = array<i32>} : memref<2x128xf32, #tpu.memory_space<vmem>>, vector<2x128xf32>,
    return
  }
}

</mosaic_0001>

<llo_original>
// kernel: forward.1
$region0: #{forward.1}
  #allocation0 [shape = 'u32[]', space=smem, size = 0x4, offset = 0x4, fixed_abs, tag = 'smem constant byte address 0x4 - core index']
  #allocation1 [shape = 'u32[144,128]{1,0:T(1,128)}', space=vmem, size = 0x12000, scoped, tag = 'internal scratch']
  %s0 = inlined_call_operand.vmem [shape: f32[512,40], index: 0, kind: input, shape index: {}]
  %s1 = inlined_call_operand.vmem [shape: f32[280,128], index: 1, kind: input, shape index: {}]
  %s2 = inlined_call_operand.vmem [shape: f32[2,128], index: 2, kind: output, shape index: {}]
  %s3 = sld [smem:[#allocation0]]
  $region18: #{forward.1} parent=0
    _
  %s5 = ssub.s32 1, %s3
  %s6 = scalar_select 0, %s5, %s3
  // Predicated region
  $region2: #{forward.1} parent=0 // pred_check
    _
  $region3: #{forward.1} parent=0 // pred_check_branch
    %8 = sbr.rel (0) target = $region5
  $region4: #{forward.1} parent=0 // pred_region
    _
  $region5: #{forward.1} parent=0 // pred_fallthru
    _
  // Predicated region
  $region6: #{forward.1} parent=0 // pred_check
    _
  $region7: #{forward.1} parent=0 // pred_check_branch
    %10 = sbr.rel (0) target = $region9
  $region8: #{forward.1} parent=0 // pred_region
    _
  $region9: #{forward.1} parent=0 // pred_fallthru
    _
  %v11 = vld [vmem:[%s0] sm:$0xff]
  %v12 = vld [vmem:[%s0 + $0x8] sm:$0xff]
  %v13 = vld [vmem:[%s0 + $0x10] sm:$0xff]
  %v14 = vld [vmem:[%s0 + $0x18] sm:$0xff]
  %v15 = vld [vmem:[%s0 + $0x20] sm:$0xff]
  %v16 = vld [vmem:[%s0 + $0x28] sm:$0xff]
  %v17 = vld [vmem:[%s0 + $0x30] sm:$0xff]
  %v18 = vld [vmem:[%s0 + $0x38] sm:$0xff]
  %v19 = vld [vmem:[%s0 + $0x40] sm:$0xff]
  %v20 = vld [vmem:[%s0 + $0x48] sm:$0xff]
  %v21 = vld [vmem:[%s0 + $0x50] sm:$0xff]
  %v22 = vld [vmem:[%s0 + $0x58] sm:$0xff]
  %v23 = vld [vmem:[%s0 + $0x60] sm:$0xff]
  %v24 = vld [vmem:[%s0 + $0x68] sm:$0xff]
  %v25 = vld [vmem:[%s0 + $0x70] sm:$0xff]
  %v26 = vld [vmem:[%s0 + $0x78] sm:$0xff]
  %v27 = vld [vmem:[%s0 + $0x80] sm:$0xff]
  %v28 = vld [vmem:[%s0 + $0x88] sm:$0xff]
  %v29 = vld [vmem:[%s0 + $0x90] sm:$0xff]
  %v30 = vld [vmem:[%s0 + $0x98] sm:$0xff]
  %v31 = vld [vmem:[%s0 + $0xa0] sm:$0xff]
  %v32 = vld [vmem:[%s0 + $0xa8] sm:$0xff]
  %v33 = vld [vmem:[%s0 + $0xb0] sm:$0xff]
  %v34 = vld [vmem:[%s0 + $0xb8] sm:$0xff]
  %v35 = vld [vmem:[%s0 + $0xc0] sm:$0xff]
  %v36 = vld [vmem:[%s0 + $0xc8] sm:$0xff]
  %v37 = vld [vmem:[%s0 + $0xd0] sm:$0xff]
  %v38 = vld [vmem:[%s0 + $0xd8] sm:$0xff]
  %v39 = vld [vmem:[%s0 + $0xe0] sm:$0xff]
  %v40 = vld [vmem:[%s0 + $0xe8] sm:$0xff]
  %v41 = vld [vmem:[%s0 + $0xf0] sm:$0xff]
  %v42 = vld [vmem:[%s0 + $0xf8] sm:$0xff]
  %v43 = vld [vmem:[%s0 + $0x100] sm:$0xff]
  %v44 = vld [vmem:[%s0 + $0x108] sm:$0xff]
  %v45 = vld [vmem:[%s0 + $0x110] sm:$0xff]
  %v46 = vld [vmem:[%s0 + $0x118] sm:$0xff]
  %v47 = vld [vmem:[%s0 + $0x120] sm:$0xff]
  %v48 = vld [vmem:[%s0 + $0x128] sm:$0xff]
  %v49 = vld [vmem:[%s0 + $0x130] sm:$0xff]
  %v50 = vld [vmem:[%s0 + $0x138] sm:$0xff]
  %v51 = vld [vmem:[%s0 + $0x140] sm:$0xff]
  %v52 = vld [vmem:[%s0 + $0x148] sm:$0xff]
  %v53 = vld [vmem:[%s0 + $0x150] sm:$0xff]
  %v54 = vld [vmem:[%s0 + $0x158] sm:$0xff]
  %v55 = vld [vmem:[%s0 + $0x160] sm:$0xff]
  %v56 = vld [vmem:[%s0 + $0x168] sm:$0xff]
  %v57 = vld [vmem:[%s0 + $0x170] sm:$0xff]
  %v58 = vld [vmem:[%s0 + $0x178] sm:$0xff]
  %v59 = vld [vmem:[%s0 + $0x180] sm:$0xff]
  %v60 = vld [vmem:[%s0 + $0x188] sm:$0xff]
  %v61 = vld [vmem:[%s0 + $0x190] sm:$0xff]
  %v62 = vld [vmem:[%s0 + $0x198] sm:$0xff]
  %v63 = vld [vmem:[%s0 + $0x1a0] sm:$0xff]
  %v64 = vld [vmem:[%s0 + $0x1a8] sm:$0xff]
  %v65 = vld [vmem:[%s0 + $0x1b0] sm:$0xff]
  %v66 = vld [vmem:[%s0 + $0x1b8] sm:$0xff]
  %v67 = vld [vmem:[%s0 + $0x1c0] sm:$0xff]
  %v68 = vld [vmem:[%s0 + $0x1c8] sm:$0xff]
  %v69 = vld [vmem:[%s0 + $0x1d0] sm:$0xff]
  %v70 = vld [vmem:[%s0 + $0x1d8] sm:$0xff]
  %v71 = vld [vmem:[%s0 + $0x1e0] sm:$0xff]
  %v72 = vld [vmem:[%s0 + $0x1e8] sm:$0xff]
  %v73 = vld [vmem:[%s0 + $0x1f0] sm:$0xff]
  %v74 = vld [vmem:[%s0 + $0x1f8] sm:$0xff]
  %v75 = vld [vmem:[%s1] sm:$0xff]
  %v76 = vld [vmem:[%s1 + $0x8] sm:$0xff]
  %v77 = vld [vmem:[%s1 + $0x10] sm:$0xff]
  %v78 = vld [vmem:[%s1 + $0x18] sm:$0xff]
  %v79 = vld [vmem:[%s1 + $0x20] sm:$0xff]
  %v80 = vld [vmem:[%s1 + $0x28] sm:$0x1]
  %v81 = vlaneseq
  %v82 = vshrl.u32 %v81, 7
  %v83 = vsub.s32 0, %v82
  %v84 = vrot.slane %v80, %v83
  %vm85 = vcmask 326656
  %v87 = vsel %vm85, %v11, 0
  %v90 = vsel %vm85, %v12, 0
  %v93 = vsel %vm85, %v13, 0
  %v96 = vsel %vm85, %v14, 0
  %v99 = vsel %vm85, %v15, 0
  %v102 = vsel %vm85, %v16, 0
  %v105 = vsel %vm85, %v17, 0
  %v108 = vsel %vm85, %v18, 0
  %v111 = vsel %vm85, %v19, 0
  %v114 = vsel %vm85, %v20, 0
  %v117 = vsel %vm85, %v21, 0
  %v120 = vsel %vm85, %v22, 0
  %v123 = vsel %vm85, %v23, 0
  %v126 = vsel %vm85, %v24, 0
  %v129 = vsel %vm85, %v25, 0
  %v132 = vsel %vm85, %v26, 0
  %v135 = vsel %vm85, %v27, 0
  %v138 = vsel %vm85, %v28, 0
  %v141 = vsel %vm85, %v29, 0
  %v144 = vsel %vm85, %v30, 0
  %v147 = vsel %vm85, %v31, 0
  %v150 = vsel %vm85, %v32, 0
  %v153 = vsel %vm85, %v33, 0
  %v156 = vsel %vm85, %v34, 0
  %v159 = vsel %vm85, %v35, 0
  %v162 = vsel %vm85, %v36, 0
  %v165 = vsel %vm85, %v37, 0
  %v168 = vsel %vm85, %v38, 0
  %v171 = vsel %vm85, %v39, 0
  %v174 = vsel %vm85, %v40, 0
  %v177 = vsel %vm85, %v41, 0
  %v180 = vsel %vm85, %v42, 0
  %v183 = vsel %vm85, %v43, 0
  %v186 = vsel %vm85, %v44, 0
  %v189 = vsel %vm85, %v45, 0
  %v192 = vsel %vm85, %v46, 0
  %v195 = vsel %vm85, %v47, 0
  %v198 = vsel %vm85, %v48, 0
  %v201 = vsel %vm85, %v49, 0
  %v204 = vsel %vm85, %v50, 0
  %v207 = vsel %vm85, %v51, 0
  %v210 = vsel %vm85, %v52, 0
  %v213 = vsel %vm85, %v53, 0
  %v216 = vsel %vm85, %v54, 0
  %v219 = vsel %vm85, %v55, 0
  %v222 = vsel %vm85, %v56, 0
  %v225 = vsel %vm85, %v57, 0
  %v228 = vsel %vm85, %v58, 0
  %v231 = vsel %vm85, %v59, 0
  %v234 = vsel %vm85, %v60, 0
  %v237 = vsel %vm85, %v61, 0
  %v240 = vsel %vm85, %v62, 0
  %v243 = vsel %vm85, %v63, 0
  %v246 = vsel %vm85, %v64, 0
  %v249 = vsel %vm85, %v65, 0
  %v252 = vsel %vm85, %v66, 0
  %v255 = vsel %vm85, %v67, 0
  %v258 = vsel %vm85, %v68, 0
  %v261 = vsel %vm85, %v69, 0
  %v264 = vsel %vm85, %v70, 0
  %v267 = vsel %vm85, %v71, 0
  %v270 = vsel %vm85, %v72, 0
  %v273 = vsel %vm85, %v73, 0
  %v276 = vsel %vm85, %v74, 0
  %278 = vmatprep.subr.mxu0 0.0
  %279 = vmatpush1.msra.mxu0 %v75
  %280 = vmatprep.subr.mxu0 0.0
  %281 = vmatpush1.msra.mxu0 %v76
  %282 = vmatprep.subr.mxu0 0.0
  %283 = vmatpush1.msra.mxu0 %v77
  %284 = vmatprep.subr.mxu0 0.0
  %285 = vmatpush1.msra.mxu0 %v78
  %286 = vmatprep.subr.mxu0 0.0
  %287 = vmatpush1.msra.mxu0 %v79
  %288 = vmatprep.subr.mxu0 0.0
  %289 = vmatpush1.msra.mxu0 0.0
  %290 = vmatprep.subr.mxu0 0.0
  %291 = vmatpush1.msra.mxu0 0.0
  %292 = vmatprep.subr.mxu0 0.0
  %293 = vmatpush1.msra.mxu0 0.0
  %294 = vmatprep.subr.mxu0 0.0
  %295 = vmatpush1.msra.mxu0 0.0
  %296 = vmatprep.subr.mxu0 0.0
  %297 = vmatpush1.msra.mxu0 0.0
  %298 = vmatprep.subr.mxu0 0.0
  %299 = vmatpush1.msra.mxu0 0.0
  %300 = vmatprep.subr.mxu0 0.0
  %301 = vmatpush1.msra.mxu0 0.0
  %302 = vmatprep.subr.mxu0 0.0
  %303 = vmatpush1.msra.mxu0 0.0
  %304 = vmatprep.subr.mxu0 0.0
  %305 = vmatpush1.msra.mxu0 0.0
  %306 = vmatprep.subr.mxu0 0.0
  %307 = vmatpush1.msra.mxu0 0.0
  %308 = vmatprep.subr.mxu0 0.0
  %309 = vmatpush1.msra.mxu0 0.0
  %310 = vmatprep.subr.mxu0 0.0
  %311 = vmatpush1.msra.mxu0 0.0
  %312 = vmatprep.subr.mxu0 0.0
  %313 = vmatpush1.msra.mxu0 0.0
  %314 = vmatprep.subr.mxu0 0.0
  %315 = vmatpush1.msra.mxu0 0.0
  %316 = vmatprep.subr.mxu0 0.0
  %317 = vmatpush1.msra.mxu0 0.0
  %318 = vmatprep.subr.mxu0 0.0
  %319 = vmatpush1.msra.mxu0 0.0
  %320 = vmatprep.subr.mxu0 0.0
  %321 = vmatpush1.msra.mxu0 0.0
  %322 = vmatprep.subr.mxu0 0.0
  %323 = vmatpush1.msra.mxu0 0.0
  %324 = vmatprep.subr.mxu0 0.0
  %325 = vmatpush1.msra.mxu0 0.0
  %326 = vmatprep.subr.mxu0 0.0
  %327 = vmatpush1.msra.mxu0 0.0
  %328 = vmatprep.subr.mxu0 0.0
  %329 = vmatpush1.msra.mxu0 0.0
  %330 = vmatprep.subr.mxu0 0.0
  %331 = vmatpush1.msra.mxu0 0.0
  %332 = vmatprep.subr.mxu0 0.0
  %333 = vmatpush1.msra.mxu0 0.0
  %334 = vmatprep.subr.mxu0 0.0
  %335 = vmatpush1.msra.mxu0 0.0
  %336 = vmatprep.subr.mxu0 0.0
  %337 = vmatpush1.msra.mxu0 0.0
  %338 = vmatprep.subr.mxu0 0.0
  %339 = vmatpush1.msra.mxu0 0.0
  %340 = vmatprep.subr.mxu0 0.0
  %341 = vmatpush1.msra.mxu0 0.0
  %342 = vmatprep.mubr.f32.mxu0 0.0
  %343 = vmatmul.mubr.f32.gmra.mrb[0].mxu0 %v87
  %v344 = vpop.f32.mrb[0].mxu0
  %v345 = vadd.f32 %v84, %v344
  %v346 = vpop.f32.mrb[0].mxu0
  %347 = vmatprep.mubr.f32.mxu0 0.0
  %348 = vmatmul.mubr.f32.gmra.mrb[0].mxu0 %v90
  %v349 = vpop.f32.mrb[0].mxu0
  %v350 = vadd.f32 %v84, %v349
  %v351 = vpop.f32.mrb[0].mxu0
  %352 = vmatprep.mubr.f32.mxu0 0.0
  %353 = vmatmul.mubr.f32.gmra.mrb[0].mxu0 %v93
  %v354 = vpop.f32.mrb[0].mxu0
  %v355 = vadd.f32 %v84, %v354
  %v356 = vpop.f32.mrb[0].mxu0
  %357 = vmatprep.mubr.f32.mxu0 0.0
  %358 = vmatmul.mubr.f32.gmra.mrb[0].mxu0 %v96
  %v359 = vpop.f32.mrb[0].mxu0
  %v360 = vadd.f32 %v84, %v359
  %v361 = vpop.f32.mrb[0].mxu0
  %362 = vmatprep.mubr.f32.mxu0 0.0
  %363 = vmatmul.mubr.f32.gmra.mrb[0].mxu0 %v99
  %v364 = vpop.f32.mrb[0].mxu0
  %v365 = vadd.f32 %v84, %v364
  %v366 = vpop.f32.mrb[0].mxu0
  %367 = vmatprep.mubr.f32.mxu0 0.0
  %368 = vmatmul.mubr.f32.gmra.mrb[0].mxu0 %v102
  %v369 = vpop.f32.mrb[0].mxu0
  %v370 = vadd.f32 %v84, %v369
  %v371 = vpop.f32.mrb[0].mxu0
  %372 = vmatprep.mubr.f32.mxu0 0.0
  %373 = vmatmul.mubr.f32.gmra.mrb[0].mxu0 %v105
  %v374 = vpop.f32.mrb[0].mxu0
  %v375 = vadd.f32 %v84, %v374
  %v376 = vpop.f32.mrb[0].mxu0
  %377 = vmatprep.mubr.f32.mxu0 0.0
  %378 = vmatmul.mubr.f32.gmra.mrb[0].mxu0 %v108
  %v379 = vpop.f32.mrb[0].mxu0
  %v380 = vadd.f32 %v84, %v379
  %v381 = vpop.f32.mrb[0].mxu0
  %382 = vmatprep.mubr.f32.mxu0 0.0
  %383 = vmatmul.mubr.f32.gmra.mrb[0].mxu0 %v111
  %v384 = vpop.f32.mrb[0].mxu0
  %v385 = vadd.f32 %v84, %v384
  %v386 = vpop.f32.mrb[0].mxu0
  %387 = vmatprep.mubr.f32.mxu0 0.0
  %388 = vmatmul.mubr.f32.gmra.mrb[0].mxu0 %v114
  %v389 = vpop.f32.mrb[0].mxu0
  %v390 = vadd.f32 %v84, %v389
  %v391 = vpop.f32.mrb[0].mxu0
  %392 = vmatprep.mubr.f32.mxu0 0.0
  %393 = vmatmul.mubr.f32.gmra.mrb[0].mxu0 %v117
  %v394 = vpop.f32.mrb[0].mxu0
  %v395 = vadd.f32 %v84, %v394
  %v396 = vpop.f32.mrb[0].mxu0
  %397 = vmatprep.mubr.f32.mxu0 0.0
  %398 = vmatmul.mubr.f32.gmra.mrb[0].mxu0 %v120
  %v399 = vpop.f32.mrb[0].mxu0
  %v400 = vadd.f32 %v84, %v399
  %v401 = vpop.f32.mrb[0].mxu0
  %402 = vmatprep.mubr.f32.mxu0 0.0
  %403 = vmatmul.mubr.f32.gmra.mrb[0].mxu0 %v123
  %v404 = vpop.f32.mrb[0].mxu0
  %v405 = vadd.f32 %v84, %v404
  %v406 = vpop.f32.mrb[0].mxu0
  %407 = vmatprep.mubr.f32.mxu0 0.0
  %408 = vmatmul.mubr.f32.gmra.mrb[0].mxu0 %v126
  %v409 = vpop.f32.mrb[0].mxu0
  %v410 = vadd.f32 %v84, %v409
  %v411 = vpop.f32.mrb[0].mxu0
  %412 = vmatprep.mubr.f32.mxu0 0.0
  %413 = vmatmul.mubr.f32.gmra.mrb[0].mxu0 %v129
  %v414 = vpop.f32.mrb[0].mxu0
  %v415 = vadd.f32 %v84, %v414
  %v416 = vpop.f32.mrb[0].mxu0
  %417 = vmatprep.mubr.f32.mxu0 0.0
  %418 = vmatmul.mubr.f32.gmra.mrb[0].mxu0 %v132
  %v419 = vpop.f32.mrb[0].mxu0
  %v420 = vadd.f32 %v84, %v419
  %v421 = vpop.f32.mrb[0].mxu0
  %422 = vmatprep.mubr.f32.mxu0 0.0
  %423 = vmatmul.mubr.f32.gmra.mrb[0].mxu0 %v135
  %v424 = vpop.f32.mrb[0].mxu0
  %v425 = vadd.f32 %v84, %v424
  %v426 = vpop.f32.mrb[0].mxu0
  %427 = vmatprep.mubr.f32.mxu0 0.0
  %428 = vmatmul.mubr.f32.gmra.mrb[0].mxu0 %v138
  %v429 = vpop.f32.mrb[0].mxu0
  %v430 = vadd.f32 %v84, %v429
  %v431 = vpop.f32.mrb[0].mxu0
  %432 = vmatprep.mubr.f32.mxu0 0.0
  %433 = vmatmul.mubr.f32.gmra.mrb[0].mxu0 %v141
  %v434 = vpop.f32.mrb[0].mxu0
  %v435 = vadd.f32 %v84, %v434
  %v436 = vpop.f32.mrb[0].mxu0
  %437 = vmatprep.mubr.f32.mxu0 0.0
  %438 = vmatmul.mubr.f32.gmra.mrb[0].mxu0 %v144
  %v439 = vpop.f32.mrb[0].mxu0
  %v440 = vadd.f32 %v84, %v439
  %v441 = vpop.f32.mrb[0].mxu0
  %442 = vmatprep.mubr.f32.mxu0 0.0
  %443 = vmatmul.mubr.f32.gmra.mrb[0].mxu0 %v147
  %v444 = vpop.f32.mrb[0].mxu0
  %v445 = vadd.f32 %v84, %v444
  %v446 = vpop.f32.mrb[0].mxu0
  %447 = vmatprep.mubr.f32.mxu0 0.0
  %448 = vmatmul.mubr.f32.gmra.mrb[0].mxu0 %v150
  %v449 = vpop.f32.mrb[0].mxu0
  %v450 = vadd.f32 %v84, %v449
  %v451 = vpop.f32.mrb[0].mxu0
  %452 = vmatprep.mubr.f32.mxu0 0.0
  %453 = vmatmul.mubr.f32.gmra.mrb[0].mxu0 %v153
  %v454 = vpop.f32.mrb[0].mxu0
  %v455 = vadd.f32 %v84, %v454
  %v456 = vpop.f32.mrb[0].mxu0
  %457 = vmatprep.mubr.f32.mxu0 0.0
  %458 = vmatmul.mubr.f32.gmra.mrb[0].mxu0 %v156
  %v459 = vpop.f32.mrb[0].mxu0
  %v460 = vadd.f32 %v84, %v459
  %v461 = vpop.f32.mrb[0].mxu0
  %462 = vmatprep.mubr.f32.mxu0 0.0
  %463 = vmatmul.mubr.f32.gmra.mrb[0].mxu0 %v159
  %v464 = vpop.f32.mrb[0].mxu0
  %v465 = vadd.f32 %v84, %v464
  %v466 = vpop.f32.mrb[0].mxu0
  %467 = vmatprep.mubr.f32.mxu0 0.0
  %468 = vmatmul.mubr.f32.gmra.mrb[0].mxu0 %v162
  %v469 = vpop.f32.mrb[0].mxu0
  %v470 = vadd.f32 %v84, %v469
  %v471 = vpop.f32.mrb[0].mxu0
  %472 = vmatprep.mubr.f32.mxu0 0.0
  %473 = vmatmul.mubr.f32.gmra.mrb[0].mxu0 %v165
  %v474 = vpop.f32.mrb[0].mxu0
  %v475 = vadd.f32 %v84, %v474
  %v476 = vpop.f32.mrb[0].mxu0
  %477 = vmatprep.mubr.f32.mxu0 0.0
  %478 = vmatmul.mubr.f32.gmra.mrb[0].mxu0 %v168
  %v479 = vpop.f32.mrb[0].mxu0
  %v480 = vadd.f32 %v84, %v479
  %v481 = vpop.f32.mrb[0].mxu0
  %482 = vmatprep.mubr.f32.mxu0 0.0
  %483 = vmatmul.mubr.f32.gmra.mrb[0].mxu0 %v171
  %v484 = vpop.f32.mrb[0].mxu0
  %v485 = vadd.f32 %v84, %v484
  %v486 = vpop.f32.mrb[0].mxu0
  %487 = vmatprep.mubr.f32.mxu0 0.0
  %488 = vmatmul.mubr.f32.gmra.mrb[0].mxu0 %v174
  %v489 = vpop.f32.mrb[0].mxu0
  %v490 = vadd.f32 %v84, %v489
  %v491 = vpop.f32.mrb[0].mxu0
  %492 = vmatprep.mubr.f32.mxu0 0.0
  %493 = vmatmul.mubr.f32.gmra.mrb[0].mxu0 %v177
  %v494 = vpop.f32.mrb[0].mxu0
  %v495 = vadd.f32 %v84, %v494
  %v496 = vpop.f32.mrb[0].mxu0
  %497 = vmatprep.mubr.f32.mxu0 0.0
  %498 = vmatmul.mubr.f32.gmra.mrb[0].mxu0 %v180
  %v499 = vpop.f32.mrb[0].mxu0
  %v500 = vadd.f32 %v84, %v499
  %v501 = vpop.f32.mrb[0].mxu0
  %502 = vmatprep.mubr.f32.mxu0 0.0
  %503 = vmatmul.mubr.f32.gmra.mrb[0].mxu0 %v183
  %v504 = vpop.f32.mrb[0].mxu0
  %v505 = vadd.f32 %v84, %v504
  %v506 = vpop.f32.mrb[0].mxu0
  %507 = vmatprep.mubr.f32.mxu0 0.0
  %508 = vmatmul.mubr.f32.gmra.mrb[0].mxu0 %v186
  %v509 = vpop.f32.mrb[0].mxu0
  %v510 = vadd.f32 %v84, %v509
  %v511 = vpop.f32.mrb[0].mxu0
  %512 = vmatprep.mubr.f32.mxu0 0.0
  %513 = vmatmul.mubr.f32.gmra.mrb[0].mxu0 %v189
  %v514 = vpop.f32.mrb[0].mxu0
  %v515 = vadd.f32 %v84, %v514
  %v516 = vpop.f32.mrb[0].mxu0
  %517 = vmatprep.mubr.f32.mxu0 0.0
  %518 = vmatmul.mubr.f32.gmra.mrb[0].mxu0 %v192
  %v519 = vpop.f32.mrb[0].mxu0
  %v520 = vadd.f32 %v84, %v519
  %v521 = vpop.f32.mrb[0].mxu0
  %522 = vmatprep.mubr.f32.mxu0 0.0
  %523 = vmatmul.mubr.f32.gmra.mrb[0].mxu0 %v195
  %v524 = vpop.f32.mrb[0].mxu0
  %v525 = vadd.f32 %v84, %v524
  %v526 = vpop.f32.mrb[0].mxu0
  %527 = vmatprep.mubr.f32.mxu0 0.0
  %528 = vmatmul.mubr.f32.gmra.mrb[0].mxu0 %v198
  %v529 = vpop.f32.mrb[0].mxu0
  %v530 = vadd.f32 %v84, %v529
  %v531 = vpop.f32.mrb[0].mxu0
  %532 = vmatprep.mubr.f32.mxu0 0.0
  %533 = vmatmul.mubr.f32.gmra.mrb[0].mxu0 %v201
  %v534 = vpop.f32.mrb[0].mxu0
  %v535 = vadd.f32 %v84, %v534
  %v536 = vpop.f32.mrb[0].mxu0
  %537 = vmatprep.mubr.f32.mxu0 0.0
  %538 = vmatmul.mubr.f32.gmra.mrb[0].mxu0 %v204
  %v539 = vpop.f32.mrb[0].mxu0
  %v540 = vadd.f32 %v84, %v539
  %v541 = vpop.f32.mrb[0].mxu0
  %542 = vmatprep.mubr.f32.mxu0 0.0
  %543 = vmatmul.mubr.f32.gmra.mrb[0].mxu0 %v207
  %v544 = vpop.f32.mrb[0].mxu0
  %v545 = vadd.f32 %v84, %v544
  %v546 = vpop.f32.mrb[0].mxu0
  %547 = vmatprep.mubr.f32.mxu0 0.0
  %548 = vmatmul.mubr.f32.gmra.mrb[0].mxu0 %v210
  %v549 = vpop.f32.mrb[0].mxu0
  %v550 = vadd.f32 %v84, %v549
  %v551 = vpop.f32.mrb[0].mxu0
  %552 = vmatprep.mubr.f32.mxu0 0.0
  %553 = vmatmul.mubr.f32.gmra.mrb[0].mxu0 %v213
  %v554 = vpop.f32.mrb[0].mxu0
  %v555 = vadd.f32 %v84, %v554
  %v556 = vpop.f32.mrb[0].mxu0
  %557 = vmatprep.mubr.f32.mxu0 0.0
  %558 = vmatmul.mubr.f32.gmra.mrb[0].mxu0 %v216
  %v559 = vpop.f32.mrb[0].mxu0
  %v560 = vadd.f32 %v84, %v559
  %v561 = vpop.f32.mrb[0].mxu0
  %562 = vmatprep.mubr.f32.mxu0 0.0
  %563 = vmatmul.mubr.f32.gmra.mrb[0].mxu0 %v219
  %v564 = vpop.f32.mrb[0].mxu0
  %v565 = vadd.f32 %v84, %v564
  %v566 = vpop.f32.mrb[0].mxu0
  %567 = vmatprep.mubr.f32.mxu0 0.0
  %568 = vmatmul.mubr.f32.gmra.mrb[0].mxu0 %v222
  %v569 = vpop.f32.mrb[0].mxu0
  %v570 = vadd.f32 %v84, %v569
  %v571 = vpop.f32.mrb[0].mxu0
  %572 = vmatprep.mubr.f32.mxu0 0.0
  %573 = vmatmul.mubr.f32.gmra.mrb[0].mxu0 %v225
  %v574 = vpop.f32.mrb[0].mxu0
  %v575 = vadd.f32 %v84, %v574
  %v576 = vpop.f32.mrb[0].mxu0
  %577 = vmatprep.mubr.f32.mxu0 0.0
  %578 = vmatmul.mubr.f32.gmra.mrb[0].mxu0 %v228
  %v579 = vpop.f32.mrb[0].mxu0
  %v580 = vadd.f32 %v84, %v579
  %v581 = vpop.f32.mrb[0].mxu0
  %582 = vmatprep.mubr.f32.mxu0 0.0
  %583 = vmatmul.mubr.f32.gmra.mrb[0].mxu0 %v231
  %v584 = vpop.f32.mrb[0].mxu0
  %v585 = vadd.f32 %v84, %v584
  %v586 = vpop.f32.mrb[0].mxu0
  %587 = vmatprep.mubr.f32.mxu0 0.0
  %588 = vmatmul.mubr.f32.gmra.mrb[0].mxu0 %v234
  %v589 = vpop.f32.mrb[0].mxu0
  %v590 = vadd.f32 %v84, %v589
  %v591 = vpop.f32.mrb[0].mxu0
  %592 = vmatprep.mubr.f32.mxu0 0.0
  %593 = vmatmul.mubr.f32.gmra.mrb[0].mxu0 %v237
  %v594 = vpop.f32.mrb[0].mxu0
  %v595 = vadd.f32 %v84, %v594
  %v596 = vpop.f32.mrb[0].mxu0
  %597 = vmatprep.mubr.f32.mxu0 0.0
  %598 = vmatmul.mubr.f32.gmra.mrb[0].mxu0 %v240
  %v599 = vpop.f32.mrb[0].mxu0
  %v600 = vadd.f32 %v84, %v599
  %v601 = vpop.f32.mrb[0].mxu0
  %602 = vmatprep.mubr.f32.mxu0 0.0
  %603 = vmatmul.mubr.f32.gmra.mrb[0].mxu0 %v243
  %v604 = vpop.f32.mrb[0].mxu0
  %v605 = vadd.f32 %v84, %v604
  %v606 = vpop.f32.mrb[0].mxu0
  %607 = vmatprep.mubr.f32.mxu0 0.0
  %608 = vmatmul.mubr.f32.gmra.mrb[0].mxu0 %v246
  %v609 = vpop.f32.mrb[0].mxu0
  %v610 = vadd.f32 %v84, %v609
  %v611 = vpop.f32.mrb[0].mxu0
  %612 = vmatprep.mubr.f32.mxu0 0.0
  %613 = vmatmul.mubr.f32.gmra.mrb[0].mxu0 %v249
  %v614 = vpop.f32.mrb[0].mxu0
  %v615 = vadd.f32 %v84, %v614
  %v616 = vpop.f32.mrb[0].mxu0
  %617 = vmatprep.mubr.f32.mxu0 0.0
  %618 = vmatmul.mubr.f32.gmra.mrb[0].mxu0 %v252
  %v619 = vpop.f32.mrb[0].mxu0
  %v620 = vadd.f32 %v84, %v619
  %v621 = vpop.f32.mrb[0].mxu0
  %622 = vmatprep.mubr.f32.mxu0 0.0
  %623 = vmatmul.mubr.f32.gmra.mrb[0].mxu0 %v255
  %v624 = vpop.f32.mrb[0].mxu0
  %v625 = vadd.f32 %v84, %v624
  %v626 = vpop.f32.mrb[0].mxu0
  %627 = vmatprep.mubr.f32.mxu0 0.0
  %628 = vmatmul.mubr.f32.gmra.mrb[0].mxu0 %v258
  %v629 = vpop.f32.mrb[0].mxu0
  %v630 = vadd.f32 %v84, %v629
  %v631 = vpop.f32.mrb[0].mxu0
  %632 = vmatprep.mubr.f32.mxu0 0.0
  %633 = vmatmul.mubr.f32.gmra.mrb[0].mxu0 %v261
  %v634 = vpop.f32.mrb[0].mxu0
  %v635 = vadd.f32 %v84, %v634
  %v636 = vpop.f32.mrb[0].mxu0
  %637 = vmatprep.mubr.f32.mxu0 0.0
  %638 = vmatmul.mubr.f32.gmra.mrb[0].mxu0 %v264
  %v639 = vpop.f32.mrb[0].mxu0
  %v640 = vadd.f32 %v84, %v639
  %v641 = vpop.f32.mrb[0].mxu0
  %642 = vmatprep.mubr.f32.mxu0 0.0
  %643 = vmatmul.mubr.f32.gmra.mrb[0].mxu0 %v267
  %v644 = vpop.f32.mrb[0].mxu0
  %v645 = vadd.f32 %v84, %v644
  %v646 = vpop.f32.mrb[0].mxu0
  %647 = vmatprep.mubr.f32.mxu0 0.0
  %648 = vmatmul.mubr.f32.gmra.mrb[0].mxu0 %v270
  %v649 = vpop.f32.mrb[0].mxu0
  %v650 = vadd.f32 %v84, %v649
  %v651 = vpop.f32.mrb[0].mxu0
  %652 = vmatprep.mubr.f32.mxu0 0.0
  %653 = vmatmul.mubr.f32.gmra.mrb[0].mxu0 %v273
  %v654 = vpop.f32.mrb[0].mxu0
  %v655 = vadd.f32 %v84, %v654
  %v656 = vpop.f32.mrb[0].mxu0
  %657 = vmatprep.mubr.f32.mxu0 0.0
  %658 = vmatmul.mubr.f32.gmra.mrb[0].mxu0 %v276
  %v659 = vpop.f32.mrb[0].mxu0
  %v660 = vadd.f32 %v84, %v659
  %v661 = vpop.f32.mrb[0].mxu0
  %662 = vdwg.mxu0
  %v663 = vmax.f32 %v345, 0.0
  %v664 = vmax.f32 %v350, 0.0
  %v665 = vmax.f32 %v355, 0.0
  %v666 = vmax.f32 %v360, 0.0
  %v667 = vmax.f32 %v365, 0.0
  %v668 = vmax.f32 %v370, 0.0
  %v669 = vmax.f32 %v375, 0.0
  %v670 = vmax.f32 %v380, 0.0
  %v671 = vmax.f32 %v385, 0.0
  %v672 = vmax.f32 %v390, 0.0
  %v673 = vmax.f32 %v395, 0.0
  %v674 = vmax.f32 %v400, 0.0
  %v675 = vmax.f32 %v405, 0.0
  %v676 = vmax.f32 %v410, 0.0
  %v677 = vmax.f32 %v415, 0.0
  %v678 = vmax.f32 %v420, 0.0
  %v679 = vmax.f32 %v425, 0.0
  %v680 = vmax.f32 %v430, 0.0
  %v681 = vmax.f32 %v435, 0.0
  %v682 = vmax.f32 %v440, 0.0
  %v683 = vmax.f32 %v445, 0.0
  %v684 = vmax.f32 %v450, 0.0
  %v685 = vmax.f32 %v455, 0.0
  %v686 = vmax.f32 %v460, 0.0
  %v687 = vmax.f32 %v465, 0.0
  %v688 = vmax.f32 %v470, 0.0
  %v689 = vmax.f32 %v475, 0.0
  %v690 = vmax.f32 %v480, 0.0
  %v691 = vmax.f32 %v485, 0.0
  %v692 = vmax.f32 %v490, 0.0
  %v693 = vmax.f32 %v495, 0.0
  %v694 = vmax.f32 %v500, 0.0
  %v695 = vmax.f32 %v505, 0.0
  %v696 = vmax.f32 %v510, 0.0
  %v697 = vmax.f32 %v515, 0.0
  %v698 = vmax.f32 %v520, 0.0
  %v699 = vmax.f32 %v525, 0.0
  %v700 = vmax.f32 %v530, 0.0
  %v701 = vmax.f32 %v535, 0.0
  %v702 = vmax.f32 %v540, 0.0
  %v703 = vmax.f32 %v545, 0.0
  %v704 = vmax.f32 %v550, 0.0
  %v705 = vmax.f32 %v555, 0.0
  %v706 = vmax.f32 %v560, 0.0
  %v707 = vmax.f32 %v565, 0.0
  %v708 = vmax.f32 %v570, 0.0
  %v709 = vmax.f32 %v575, 0.0
  %v710 = vmax.f32 %v580, 0.0
  %v711 = vmax.f32 %v585, 0.0
  %v712 = vmax.f32 %v590, 0.0
  %v713 = vmax.f32 %v595, 0.0
  %v714 = vmax.f32 %v600, 0.0
  %v715 = vmax.f32 %v605, 0.0
  %v716 = vmax.f32 %v610, 0.0
  %v717 = vmax.f32 %v615, 0.0
  %v718 = vmax.f32 %v620, 0.0
  %v719 = vmax.f32 %v625, 0.0
  %v720 = vmax.f32 %v630, 0.0
  %v721 = vmax.f32 %v635, 0.0
  %v722 = vmax.f32 %v640, 0.0
  %v723 = vmax.f32 %v645, 0.0
  %v724 = vmax.f32 %v650, 0.0
  %v725 = vmax.f32 %v655, 0.0
  %v726 = vmax.f32 %v660, 0.0
  %vm727 = vcmask 261120
  %v728 = vsel %vm727, %v663, 0.0
  %v729 = vsel %vm727, %v664, 0.0
  %v730 = vadd.f32 %v728, %v729
  %v731 = vsel %vm727, %v665, 0.0
  %v732 = vadd.f32 %v730, %v731
  %v733 = vsel %vm727, %v666, 0.0
  %v734 = vadd.f32 %v732, %v733
  %v735 = vsel %vm727, %v667, 0.0
  %v736 = vadd.f32 %v734, %v735
  %v737 = vsel %vm727, %v668, 0.0
  %v738 = vadd.f32 %v736, %v737
  %v739 = vsel %vm727, %v669, 0.0
  %v740 = vadd.f32 %v738, %v739
  %v741 = vsel %vm727, %v670, 0.0
  %v742 = vadd.f32 %v740, %v741
  %v743 = vsel %vm727, %v671, 0.0
  %v744 = vadd.f32 %v742, %v743
  %v745 = vsel %vm727, %v672, 0.0
  %v746 = vadd.f32 %v744, %v745
  %v747 = vsel %vm727, %v673, 0.0
  %v748 = vadd.f32 %v746, %v747
  %v749 = vsel %vm727, %v674, 0.0
  %v750 = vadd.f32 %v748, %v749
  %v751 = vsel %vm727, %v675, 0.0
  %v752 = vadd.f32 %v750, %v751
  %v753 = vsel %vm727, %v676, 0.0
  %v754 = vadd.f32 %v752, %v753
  %v755 = vsel %vm727, %v677, 0.0
  %v756 = vadd.f32 %v754, %v755
  %v757 = vsel %vm727, %v678, 0.0
  %v758 = vadd.f32 %v756, %v757
  %v759 = vsel %vm727, %v679, 0.0
  %v760 = vadd.f32 %v758, %v759
  %v761 = vsel %vm727, %v680, 0.0
  %v762 = vadd.f32 %v760, %v761
  %v763 = vsel %vm727, %v681, 0.0
  %v764 = vadd.f32 %v762, %v763
  %v765 = vsel %vm727, %v682, 0.0
  %v766 = vadd.f32 %v764, %v765
  %v767 = vsel %vm727, %v683, 0.0
  %v768 = vadd.f32 %v766, %v767
  %v769 = vsel %vm727, %v684, 0.0
  %v770 = vadd.f32 %v768, %v769
  %v771 = vsel %vm727, %v685, 0.0
  %v772 = vadd.f32 %v770, %v771
  %v773 = vsel %vm727, %v686, 0.0
  %v774 = vadd.f32 %v772, %v773
  %v775 = vsel %vm727, %v687, 0.0
  %v776 = vadd.f32 %v774, %v775
  %v777 = vsel %vm727, %v688, 0.0
  %v778 = vadd.f32 %v776, %v777
  %v779 = vsel %vm727, %v689, 0.0
  %v780 = vadd.f32 %v778, %v779
  %v781 = vsel %vm727, %v690, 0.0
  %v782 = vadd.f32 %v780, %v781
  %v783 = vsel %vm727, %v691, 0.0
  %v784 = vadd.f32 %v782, %v783
  %v785 = vsel %vm727, %v692, 0.0
  %v786 = vadd.f32 %v784, %v785
  %v787 = vsel %vm727, %v693, 0.0
  %v788 = vadd.f32 %v786, %v787
  %v789 = vsel %vm727, %v694, 0.0
  %v790 = vadd.f32 %v788, %v789
  %v791 = vrot.slane %v790, 4
  %v792 = vadd.f32 %v790, %v791
  %v793 = vrot.slane %v792, 2
  %v794 = vadd.f32 %v792, %v793
  %v795 = vrot.slane %v794, 1
  %v796 = vadd.f32 %v794, %v795
  %v797 = vsel %vm727, %v695, 0.0
  %v798 = vsel %vm727, %v696, 0.0
  %v799 = vadd.f32 %v797, %v798
  %v800 = vsel %vm727, %v697, 0.0
  %v801 = vadd.f32 %v799, %v800
  %v802 = vsel %vm727, %v698, 0.0
  %v803 = vadd.f32 %v801, %v802
  %v804 = vsel %vm727, %v699, 0.0
  %v805 = vadd.f32 %v803, %v804
  %v806 = vsel %vm727, %v700, 0.0
  %v807 = vadd.f32 %v805, %v806
  %v808 = vsel %vm727, %v701, 0.0
  %v809 = vadd.f32 %v807, %v808
  %v810 = vsel %vm727, %v702, 0.0
  %v811 = vadd.f32 %v809, %v810
  %v812 = vsel %vm727, %v703, 0.0
  %v813 = vadd.f32 %v811, %v812
  %v814 = vsel %vm727, %v704, 0.0
  %v815 = vadd.f32 %v813, %v814
  %v816 = vsel %vm727, %v705, 0.0
  %v817 = vadd.f32 %v815, %v816
  %v818 = vsel %vm727, %v706, 0.0
  %v819 = vadd.f32 %v817, %v818
  %v820 = vsel %vm727, %v707, 0.0
  %v821 = vadd.f32 %v819, %v820
  %v822 = vsel %vm727, %v708, 0.0
  %v823 = vadd.f32 %v821, %v822
  %v824 = vsel %vm727, %v709, 0.0
  %v825 = vadd.f32 %v823, %v824
  %v826 = vsel %vm727, %v710, 0.0
  %v827 = vadd.f32 %v825, %v826
  %v828 = vsel %vm727, %v711, 0.0
  %v829 = vadd.f32 %v827, %v828
  %v830 = vsel %vm727, %v712, 0.0
  %v831 = vadd.f32 %v829, %v830
  %v832 = vsel %vm727, %v713, 0.0
  %v833 = vadd.f32 %v831, %v832
  %v834 = vsel %vm727, %v714, 0.0
  %v835 = vadd.f32 %v833, %v834
  %v836 = vsel %vm727, %v715, 0.0
  %v837 = vadd.f32 %v835, %v836
  %v838 = vsel %vm727, %v716, 0.0
  %v839 = vadd.f32 %v837, %v838
  %v840 = vsel %vm727, %v717, 0.0
  %v841 = vadd.f32 %v839, %v840
  %v842 = vsel %vm727, %v718, 0.0
  %v843 = vadd.f32 %v841, %v842
  %v844 = vsel %vm727, %v719, 0.0
  %v845 = vadd.f32 %v843, %v844
  %v846 = vsel %vm727, %v720, 0.0
  %v847 = vadd.f32 %v845, %v846
  %v848 = vsel %vm727, %v721, 0.0
  %v849 = vadd.f32 %v847, %v848
  %v850 = vsel %vm727, %v722, 0.0
  %v851 = vadd.f32 %v849, %v850
  %v852 = vsel %vm727, %v723, 0.0
  %v853 = vadd.f32 %v851, %v852
  %v854 = vsel %vm727, %v724, 0.0
  %v855 = vadd.f32 %v853, %v854
  %v856 = vsel %vm727, %v725, 0.0
  %v857 = vadd.f32 %v855, %v856
  %v858 = vsel %vm727, %v726, 0.0
  %v859 = vadd.f32 %v857, %v858
  %v860 = vrot.slane %v859, 4
  %v861 = vadd.f32 %v859, %v860
  %v862 = vrot.slane %v861, 2
  %v863 = vadd.f32 %v861, %v862
  %v864 = vrot.slane %v863, 1
  %v865 = vadd.f32 %v863, %v864
  %v866 = vmul.f32 %v796, 0.00390625
  %v867 = vmul.f32 %v865, 0.00390625
  %v868 = vld [vmem:[%s1 + $0x30] sm:$0xff]
  %v869 = vld [vmem:[%s1 + $0x38] sm:$0xff]
  %v870 = vld [vmem:[%s1 + $0x40] sm:$0xff]
  %v871 = vld [vmem:[%s1 + $0x48] sm:$0xff]
  %v872 = vld [vmem:[%s1 + $0x50] sm:$0x1]
  %v873 = vlaneseq
  %v874 = vshrl.u32 %v873, 7
  %v875 = vsub.s32 0, %v874
  %v876 = vrot.slane %v872, %v875
  %vm879 = vcmask 1041409
  %v880 = vsel %vm879, %v867, %v866
  %v881 = vsel %vm727, %v880, 0
  %883 = vmatprep.subr.mxu0 0.0
  %884 = vmatpush1.msra.mxu0 %v868
  %885 = vmatprep.subr.mxu0 0.0
  %886 = vmatpush1.msra.mxu0 %v869
  %887 = vmatprep.subr.mxu0 0.0
  %888 = vmatpush1.msra.mxu0 %v870
  %889 = vmatprep.subr.mxu0 0.0
  %890 = vmatpush1.msra.mxu0 %v871
  %891 = vmatprep.subr.mxu0 0.0
  %892 = vmatpush1.msra.mxu0 0.0
  %893 = vmatprep.subr.mxu0 0.0
  %894 = vmatpush1.msra.mxu0 0.0
  %895 = vmatprep.subr.mxu0 0.0
  %896 = vmatpush1.msra.mxu0 0.0
  %897 = vmatprep.subr.mxu0 0.0
  %898 = vmatpush1.msra.mxu0 0.0
  %899 = vmatprep.subr.mxu0 0.0
  %900 = vmatpush1.msra.mxu0 0.0
  %901 = vmatprep.subr.mxu0 0.0
  %902 = vmatpush1.msra.mxu0 0.0
  %903 = vmatprep.subr.mxu0 0.0
  %904 = vmatpush1.msra.mxu0 0.0
  %905 = vmatprep.subr.mxu0 0.0
  %906 = vmatpush1.msra.mxu0 0.0
  %907 = vmatprep.subr.mxu0 0.0
  %908 = vmatpush1.msra.mxu0 0.0
  %909 = vmatprep.subr.mxu0 0.0
  %910 = vmatpush1.msra.mxu0 0.0
  %911 = vmatprep.subr.mxu0 0.0
  %912 = vmatpush1.msra.mxu0 0.0
  %913 = vmatprep.subr.mxu0 0.0
  %914 = vmatpush1.msra.mxu0 0.0
  %915 = vmatprep.subr.mxu0 0.0
  %916 = vmatpush1.msra.mxu0 0.0
  %917 = vmatprep.subr.mxu0 0.0
  %918 = vmatpush1.msra.mxu0 0.0
  %919 = vmatprep.subr.mxu0 0.0
  %920 = vmatpush1.msra.mxu0 0.0
  %921 = vmatprep.subr.mxu0 0.0
  %922 = vmatpush1.msra.mxu0 0.0
  %923 = vmatprep.subr.mxu0 0.0
  %924 = vmatpush1.msra.mxu0 0.0
  %925 = vmatprep.subr.mxu0 0.0
  %926 = vmatpush1.msra.mxu0 0.0
  %927 = vmatprep.subr.mxu0 0.0
  %928 = vmatpush1.msra.mxu0 0.0
  %929 = vmatprep.subr.mxu0 0.0
  %930 = vmatpush1.msra.mxu0 0.0
  %931 = vmatprep.subr.mxu0 0.0
  %932 = vmatpush1.msra.mxu0 0.0
  %933 = vmatprep.subr.mxu0 0.0
  %934 = vmatpush1.msra.mxu0 0.0
  %935 = vmatprep.subr.mxu0 0.0
  %936 = vmatpush1.msra.mxu0 0.0
  %937 = vmatprep.subr.mxu0 0.0
  %938 = vmatpush1.msra.mxu0 0.0
  %939 = vmatprep.subr.mxu0 0.0
  %940 = vmatpush1.msra.mxu0 0.0
  %941 = vmatprep.subr.mxu0 0.0
  %942 = vmatpush1.msra.mxu0 0.0
  %943 = vmatprep.subr.mxu0 0.0
  %944 = vmatpush1.msra.mxu0 0.0
  %945 = vmatprep.subr.mxu0 0.0
  %946 = vmatpush1.msra.mxu0 0.0
  %947 = vmatprep.mubr.f32.mxu0 0.0
  %948 = vmatmul.mubr.f32.gmra.mrb[0].mxu0 %v881
  %v949 = vpop.f32.mrb[0].mxu0
  %v950 = vadd.f32 %v876, %v949
  %v951 = vpop.f32.mrb[0].mxu0
  %952 = vdwg.mxu0
  %v953 = vld [vmem:[%s1 + $0x58] sm:$0x1]
  %v954 = vld [vmem:[%s1 + $0x60] sm:$0x1]
  %vm955 = vcmask 254976
  %v956 = vsel %vm955, %v950, 0.0
  %v957 = vrot.slane %v956, 4
  %v958 = vadd.f32 %v956, %v957
  %v959 = vrot.slane %v958, 2
  %v960 = vadd.f32 %v958, %v959
  %v961 = vrot.slane %v960, 1
  %v962 = vadd.f32 %v960, %v961
  %v963 = vrcp.pop 2.0
  %v964 = vmul.f32 %v962, %v963
  %v965 = vsub.f32 %v950, %v964
  %v966 = vmul.f32 %v965, %v965
  %v967 = vsel %vm955, %v966, 0.0
  %v968 = vrot.slane %v967, 4
  %v969 = vadd.f32 %v967, %v968
  %v970 = vrot.slane %v969, 2
  %v971 = vadd.f32 %v969, %v970
  %v972 = vrot.slane %v971, 1
  %v973 = vadd.f32 %v971, %v972
  %v974 = vmul.f32 %v973, %v963
  %v975 = vadd.f32 %v974, 1e-05
  %v976 = vrsqrt.pop %v975
  %v977 = vmul.f32 %v965, %v976
  %v978 = vlaneseq
  %v979 = vshrl.u32 %v978, 7
  %v980 = vsub.s32 0, %v979
  %v981 = vrot.slane %v953, %v980
  %v982 = vmul.f32 %v977, %v981
  %v983 = vlaneseq
  %v984 = vshrl.u32 %v983, 7
  %v985 = vsub.s32 0, %v984
  %v986 = vrot.slane %v954, %v985
  %v987 = vadd.f32 %v982, %v986
  %v988 = vmax.f32 %v987, 0.0
  %v989 = vld [vmem:[%s1 + $0x68] sm:$0xff]
  %v990 = vld [vmem:[%s1 + $0x70] sm:$0xff]
  %v991 = vld [vmem:[%s1 + $0x78] sm:$0xff]
  %v992 = vld [vmem:[%s1 + $0x80] sm:$0xff]
  %v993 = vld [vmem:[%s1 + $0x88] sm:$0x1]
  %v994 = vlaneseq
  %v995 = vshrl.u32 %v994, 7
  %v996 = vsub.s32 0, %v995
  %v997 = vrot.slane %v993, %v996
  %v999 = vsel %vm727, %v988, 0
  %1001 = vmatprep.subr.mxu0 0.0
  %1002 = vmatpush1.msra.mxu0 %v989
  %1003 = vmatprep.subr.mxu0 0.0
  %1004 = vmatpush1.msra.mxu0 %v990
  %1005 = vmatprep.subr.mxu0 0.0
  %1006 = vmatpush1.msra.mxu0 %v991
  %1007 = vmatprep.subr.mxu0 0.0
  %1008 = vmatpush1.msra.mxu0 %v992
  %1009 = vmatprep.subr.mxu0 0.0
  %1010 = vmatpush1.msra.mxu0 0.0
  %1011 = vmatprep.subr.mxu0 0.0
  %1012 = vmatpush1.msra.mxu0 0.0
  %1013 = vmatprep.subr.mxu0 0.0
  %1014 = vmatpush1.msra.mxu0 0.0
  %1015 = vmatprep.subr.mxu0 0.0
  %1016 = vmatpush1.msra.mxu0 0.0
  %1017 = vmatprep.subr.mxu0 0.0
  %1018 = vmatpush1.msra.mxu0 0.0
  %1019 = vmatprep.subr.mxu0 0.0
  %1020 = vmatpush1.msra.mxu0 0.0
  %1021 = vmatprep.subr.mxu0 0.0
  %1022 = vmatpush1.msra.mxu0 0.0
  %1023 = vmatprep.subr.mxu0 0.0
  %1024 = vmatpush1.msra.mxu0 0.0
  %1025 = vmatprep.subr.mxu0 0.0
  %1026 = vmatpush1.msra.mxu0 0.0
  %1027 = vmatprep.subr.mxu0 0.0
  %1028 = vmatpush1.msra.mxu0 0.0
  %1029 = vmatprep.subr.mxu0 0.0
  %1030 = vmatpush1.msra.mxu0 0.0
  %1031 = vmatprep.subr.mxu0 0.0
  %1032 = vmatpush1.msra.mxu0 0.0
  %1033 = vmatprep.subr.mxu0 0.0
  %1034 = vmatpush1.msra.mxu0 0.0
  %1035 = vmatprep.subr.mxu0 0.0
  %1036 = vmatpush1.msra.mxu0 0.0
  %1037 = vmatprep.subr.mxu0 0.0
  %1038 = vmatpush1.msra.mxu0 0.0
  %1039 = vmatprep.subr.mxu0 0.0
  %1040 = vmatpush1.msra.mxu0 0.0
  %1041 = vmatprep.subr.mxu0 0.0
  %1042 = vmatpush1.msra.mxu0 0.0
  %1043 = vmatprep.subr.mxu0 0.0
  %1044 = vmatpush1.msra.mxu0 0.0
  %1045 = vmatprep.subr.mxu0 0.0
  %1046 = vmatpush1.msra.mxu0 0.0
  %1047 = vmatprep.subr.mxu0 0.0
  %1048 = vmatpush1.msra.mxu0 0.0
  %1049 = vmatprep.subr.mxu0 0.0
  %1050 = vmatpush1.msra.mxu0 0.0
  %1051 = vmatprep.subr.mxu0 0.0
  %1052 = vmatpush1.msra.mxu0 0.0
  %1053 = vmatprep.subr.mxu0 0.0
  %1054 = vmatpush1.msra.mxu0 0.0
  %1055 = vmatprep.subr.mxu0 0.0
  %1056 = vmatpush1.msra.mxu0 0.0
  %1057 = vmatprep.subr.mxu0 0.0
  %1058 = vmatpush1.msra.mxu0 0.0
  %1059 = vmatprep.subr.mxu0 0.0
  %1060 = vmatpush1.msra.mxu0 0.0
  %1061 = vmatprep.subr.mxu0 0.0
  %1062 = vmatpush1.msra.mxu0 0.0
  %1063 = vmatprep.subr.mxu0 0.0
  %1064 = vmatpush1.msra.mxu0 0.0
  %1065 = vmatprep.mubr.f32.mxu0 0.0
  %1066 = vmatmul.mubr.f32.gmra.mrb[0].mxu0 %v999
  %v1067 = vpop.f32.mrb[0].mxu0
  %v1068 = vadd.f32 %v997, %v1067
  %v1069 = vpop.f32.mrb[0].mxu0
  %1070 = vdwg.mxu0
  %v1071 = vld [vmem:[%s1 + $0x90] sm:$0x1]
  %v1072 = vld [vmem:[%s1 + $0x98] sm:$0x1]
  %v1073 = vsel %vm955, %v1068, 0.0
  %v1074 = vrot.slane %v1073, 4
  %v1075 = vadd.f32 %v1073, %v1074
  %v1076 = vrot.slane %v1075, 2
  %v1077 = vadd.f32 %v1075, %v1076
  %v1078 = vrot.slane %v1077, 1
  %v1079 = vadd.f32 %v1077, %v1078
  %v1080 = vmul.f32 %v1079, %v963
  %v1081 = vsub.f32 %v1068, %v1080
  %v1082 = vmul.f32 %v1081, %v1081
  %v1083 = vsel %vm955, %v1082, 0.0
  %v1084 = vrot.slane %v1083, 4
  %v1085 = vadd.f32 %v1083, %v1084
  %v1086 = vrot.slane %v1085, 2
  %v1087 = vadd.f32 %v1085, %v1086
  %v1088 = vrot.slane %v1087, 1
  %v1089 = vadd.f32 %v1087, %v1088
  %v1090 = vmul.f32 %v1089, %v963
  %v1091 = vadd.f32 %v1090, 1e-05
  %v1092 = vrsqrt.pop %v1091
  %v1093 = vmul.f32 %v1081, %v1092
  %v1094 = vlaneseq
  %v1095 = vshrl.u32 %v1094, 7
  %v1096 = vsub.s32 0, %v1095
  %v1097 = vrot.slane %v1071, %v1096
  %v1098 = vmul.f32 %v1093, %v1097
  %v1099 = vlaneseq
  %v1100 = vshrl.u32 %v1099, 7
  %v1101 = vsub.s32 0, %v1100
  %v1102 = vrot.slane %v1072, %v1101
  %v1103 = vadd.f32 %v1098, %v1102
  %v1104 = vmax.f32 %v1103, 0.0
  %v1105 = vld [vmem:[%s1 + $0xa0] sm:$0xff]
  %v1106 = vld [vmem:[%s1 + $0xa8] sm:$0xff]
  %v1107 = vld [vmem:[%s1 + $0xb0] sm:$0xff]
  %v1108 = vld [vmem:[%s1 + $0xb8] sm:$0xff]
  %v1109 = vld [vmem:[%s1 + $0xc0] sm:$0x1]
  %v1110 = vlaneseq
  %v1111 = vshrl.u32 %v1110, 7
  %v1112 = vsub.s32 0, %v1111
  %v1113 = vrot.slane %v1109, %v1112
  %v1115 = vsel %vm727, %v1104, 0
  %1117 = vmatprep.subr.mxu0 0.0
  %1118 = vmatpush1.msra.mxu0 %v1105
  %1119 = vmatprep.subr.mxu0 0.0
  %1120 = vmatpush1.msra.mxu0 %v1106
  %1121 = vmatprep.subr.mxu0 0.0
  %1122 = vmatpush1.msra.mxu0 %v1107
  %1123 = vmatprep.subr.mxu0 0.0
  %1124 = vmatpush1.msra.mxu0 %v1108
  %1125 = vmatprep.subr.mxu0 0.0
  %1126 = vmatpush1.msra.mxu0 0.0
  %1127 = vmatprep.subr.mxu0 0.0
  %1128 = vmatpush1.msra.mxu0 0.0
  %1129 = vmatprep.subr.mxu0 0.0
  %1130 = vmatpush1.msra.mxu0 0.0
  %1131 = vmatprep.subr.mxu0 0.0
  %1132 = vmatpush1.msra.mxu0 0.0
  %1133 = vmatprep.subr.mxu0 0.0
  %1134 = vmatpush1.msra.mxu0 0.0
  %1135 = vmatprep.subr.mxu0 0.0
  %1136 = vmatpush1.msra.mxu0 0.0
  %1137 = vmatprep.subr.mxu0 0.0
  %1138 = vmatpush1.msra.mxu0 0.0
  %1139 = vmatprep.subr.mxu0 0.0
  %1140 = vmatpush1.msra.mxu0 0.0
  %1141 = vmatprep.subr.mxu0 0.0
  %1142 = vmatpush1.msra.mxu0 0.0
  %1143 = vmatprep.subr.mxu0 0.0
  %1144 = vmatpush1.msra.mxu0 0.0
  %1145 = vmatprep.subr.mxu0 0.0
  %1146 = vmatpush1.msra.mxu0 0.0
  %1147 = vmatprep.subr.mxu0 0.0
  %1148 = vmatpush1.msra.mxu0 0.0
  %1149 = vmatprep.subr.mxu0 0.0
  %1150 = vmatpush1.msra.mxu0 0.0
  %1151 = vmatprep.subr.mxu0 0.0
  %1152 = vmatpush1.msra.mxu0 0.0
  %1153 = vmatprep.subr.mxu0 0.0
  %1154 = vmatpush1.msra.mxu0 0.0
  %1155 = vmatprep.subr.mxu0 0.0
  %1156 = vmatpush1.msra.mxu0 0.0
  %1157 = vmatprep.subr.mxu0 0.0
  %1158 = vmatpush1.msra.mxu0 0.0
  %1159 = vmatprep.subr.mxu0 0.0
  %1160 = vmatpush1.msra.mxu0 0.0
  %1161 = vmatprep.subr.mxu0 0.0
  %1162 = vmatpush1.msra.mxu0 0.0
  %1163 = vmatprep.subr.mxu0 0.0
  %1164 = vmatpush1.msra.mxu0 0.0
  %1165 = vmatprep.subr.mxu0 0.0
  %1166 = vmatpush1.msra.mxu0 0.0
  %1167 = vmatprep.subr.mxu0 0.0
  %1168 = vmatpush1.msra.mxu0 0.0
  %1169 = vmatprep.subr.mxu0 0.0
  %1170 = vmatpush1.msra.mxu0 0.0
  %1171 = vmatprep.subr.mxu0 0.0
  %1172 = vmatpush1.msra.mxu0 0.0
  %1173 = vmatprep.subr.mxu0 0.0
  %1174 = vmatpush1.msra.mxu0 0.0
  %1175 = vmatprep.subr.mxu0 0.0
  %1176 = vmatpush1.msra.mxu0 0.0
  %1177 = vmatprep.subr.mxu0 0.0
  %1178 = vmatpush1.msra.mxu0 0.0
  %1179 = vmatprep.subr.mxu0 0.0
  %1180 = vmatpush1.msra.mxu0 0.0
  %1181 = vmatprep.mubr.f32.mxu0 0.0
  %1182 = vmatmul.mubr.f32.gmra.mrb[0].mxu0 %v1115
  %v1183 = vpop.f32.mrb[0].mxu0
  %v1184 = vadd.f32 %v1113, %v1183
  %v1185 = vpop.f32.mrb[0].mxu0
  %1186 = vdwg.mxu0
  %v1187 = vld [vmem:[%s1 + $0xc8] sm:$0x1]
  %v1188 = vld [vmem:[%s1 + $0xd0] sm:$0x1]
  %vm1189 = vcmask 123904
  %v1190 = vsel %vm1189, %v1184, 0.0
  %v1191 = vrot.slane %v1190, 4
  %v1192 = vadd.f32 %v1190, %v1191
  %v1193 = vrot.slane %v1192, 2
  %v1194 = vadd.f32 %v1192, %v1193
  %v1195 = vrot.slane %v1194, 1
  %v1196 = vadd.f32 %v1194, %v1195
  %v1197 = vmul.f32 %v1196, %v963
  %v1198 = vsub.f32 %v1184, %v1197
  %v1199 = vmul.f32 %v1198, %v1198
  %v1200 = vsel %vm1189, %v1199, 0.0
  %v1201 = vrot.slane %v1200, 4
  %v1202 = vadd.f32 %v1200, %v1201
  %v1203 = vrot.slane %v1202, 2
  %v1204 = vadd.f32 %v1202, %v1203
  %v1205 = vrot.slane %v1204, 1
  %v1206 = vadd.f32 %v1204, %v1205
  %v1207 = vmul.f32 %v1206, %v963
  %v1208 = vadd.f32 %v1207, 1e-05
  %v1209 = vrsqrt.pop %v1208
  %v1210 = vmul.f32 %v1198, %v1209
  %v1211 = vlaneseq
  %v1212 = vshrl.u32 %v1211, 7
  %v1213 = vsub.s32 0, %v1212
  %v1214 = vrot.slane %v1187, %v1213
  %v1215 = vmul.f32 %v1210, %v1214
  %v1216 = vlaneseq
  %v1217 = vshrl.u32 %v1216, 7
  %v1218 = vsub.s32 0, %v1217
  %v1219 = vrot.slane %v1188, %v1218
  %v1220 = vadd.f32 %v1215, %v1219
  %v1221 = vld [vmem:[%s1 + $0xd8] sm:$0xff]
  %v1222 = vld [vmem:[%s1 + $0xe0] sm:$0xff]
  %v1223 = vld [vmem:[%s1 + $0xe8] sm:$0x1]
  %v1224 = vlaneseq
  %v1225 = vshrl.u32 %v1224, 7
  %v1226 = vsub.s32 0, %v1225
  %v1227 = vrot.slane %v1223, %v1226
  %vm1228 = vcmask 130048
  %v1230 = vsel %vm1228, %v1220, 0
  %1232 = vmatprep.subr.mxu0 0.0
  %1233 = vmatpush1.msra.mxu0 %v1221
  %1234 = vmatprep.subr.mxu0 0.0
  %1235 = vmatpush1.msra.mxu0 %v1222
  %1236 = vmatprep.subr.mxu0 0.0
  %1237 = vmatpush1.msra.mxu0 0.0
  %1238 = vmatprep.subr.mxu0 0.0
  %1239 = vmatpush1.msra.mxu0 0.0
  %1240 = vmatprep.subr.mxu0 0.0
  %1241 = vmatpush1.msra.mxu0 0.0
  %1242 = vmatprep.subr.mxu0 0.0
  %1243 = vmatpush1.msra.mxu0 0.0
  %1244 = vmatprep.subr.mxu0 0.0
  %1245 = vmatpush1.msra.mxu0 0.0
  %1246 = vmatprep.subr.mxu0 0.0
  %1247 = vmatpush1.msra.mxu0 0.0
  %1248 = vmatprep.subr.mxu0 0.0
  %1249 = vmatpush1.msra.mxu0 0.0
  %1250 = vmatprep.subr.mxu0 0.0
  %1251 = vmatpush1.msra.mxu0 0.0
  %1252 = vmatprep.subr.mxu0 0.0
  %1253 = vmatpush1.msra.mxu0 0.0
  %1254 = vmatprep.subr.mxu0 0.0
  %1255 = vmatpush1.msra.mxu0 0.0
  %1256 = vmatprep.subr.mxu0 0.0
  %1257 = vmatpush1.msra.mxu0 0.0
  %1258 = vmatprep.subr.mxu0 0.0
  %1259 = vmatpush1.msra.mxu0 0.0
  %1260 = vmatprep.subr.mxu0 0.0
  %1261 = vmatpush1.msra.mxu0 0.0
  %1262 = vmatprep.subr.mxu0 0.0
  %1263 = vmatpush1.msra.mxu0 0.0
  %1264 = vmatprep.subr.mxu0 0.0
  %1265 = vmatpush1.msra.mxu0 0.0
  %1266 = vmatprep.subr.mxu0 0.0
  %1267 = vmatpush1.msra.mxu0 0.0
  %1268 = vmatprep.subr.mxu0 0.0
  %1269 = vmatpush1.msra.mxu0 0.0
  %1270 = vmatprep.subr.mxu0 0.0
  %1271 = vmatpush1.msra.mxu0 0.0
  %1272 = vmatprep.subr.mxu0 0.0
  %1273 = vmatpush1.msra.mxu0 0.0
  %1274 = vmatprep.subr.mxu0 0.0
  %1275 = vmatpush1.msra.mxu0 0.0
  %1276 = vmatprep.subr.mxu0 0.0
  %1277 = vmatpush1.msra.mxu0 0.0
  %1278 = vmatprep.subr.mxu0 0.0
  %1279 = vmatpush1.msra.mxu0 0.0
  %1280 = vmatprep.subr.mxu0 0.0
  %1281 = vmatpush1.msra.mxu0 0.0
  %1282 = vmatprep.subr.mxu0 0.0
  %1283 = vmatpush1.msra.mxu0 0.0
  %1284 = vmatprep.subr.mxu0 0.0
  %1285 = vmatpush1.msra.mxu0 0.0
  %1286 = vmatprep.subr.mxu0 0.0
  %1287 = vmatpush1.msra.mxu0 0.0
  %1288 = vmatprep.subr.mxu0 0.0
  %1289 = vmatpush1.msra.mxu0 0.0
  %1290 = vmatprep.subr.mxu0 0.0
  %1291 = vmatpush1.msra.mxu0 0.0
  %1292 = vmatprep.subr.mxu0 0.0
  %1293 = vmatpush1.msra.mxu0 0.0
  %1294 = vmatprep.subr.mxu0 0.0
  %1295 = vmatpush1.msra.mxu0 0.0
  %1296 = vmatprep.mubr.f32.mxu0 0.0
  %1297 = vmatmul.mubr.f32.gmra.mrb[0].mxu0 %v1230
  %v1298 = vpop.f32.mrb[0].mxu0
  %v1299 = vadd.f32 %v1227, %v1298
  %v1300 = vpop.f32.mrb[0].mxu0
  %1301 = vdwg.mxu0
  %v1302 = vld [vmem:[%s1 + $0xf0] sm:$0x1]
  %v1303 = vld [vmem:[%s1 + $0xf8] sm:$0x1]
  %v1304 = vsel %vm1189, %v1299, 0.0
  %v1305 = vrot.slane %v1304, 4
  %v1306 = vadd.f32 %v1304, %v1305
  %v1307 = vrot.slane %v1306, 2
  %v1308 = vadd.f32 %v1306, %v1307
  %v1309 = vrot.slane %v1308, 1
  %v1310 = vadd.f32 %v1308, %v1309
  %v1311 = vmul.f32 %v1310, %v963
  %v1312 = vsub.f32 %v1299, %v1311
  %v1313 = vmul.f32 %v1312, %v1312
  %v1314 = vsel %vm1189, %v1313, 0.0
  %v1315 = vrot.slane %v1314, 4
  %v1316 = vadd.f32 %v1314, %v1315
  %v1317 = vrot.slane %v1316, 2
  %v1318 = vadd.f32 %v1316, %v1317
  %v1319 = vrot.slane %v1318, 1
  %v1320 = vadd.f32 %v1318, %v1319
  %v1321 = vmul.f32 %v1320, %v963
  %v1322 = vadd.f32 %v1321, 1e-05
  %v1323 = vrsqrt.pop %v1322
  %v1324 = vmul.f32 %v1312, %v1323
  %v1325 = vlaneseq
  %v1326 = vshrl.u32 %v1325, 7
  %v1327 = vsub.s32 0, %v1326
  %v1328 = vrot.slane %v1302, %v1327
  %v1329 = vmul.f32 %v1324, %v1328
  %v1330 = vlaneseq
  %v1331 = vshrl.u32 %v1330, 7
  %v1332 = vsub.s32 0, %v1331
  %v1333 = vrot.slane %v1303, %v1332
  %v1334 = vadd.f32 %v1329, %v1333
  %v1335 = vmax.f32 %v1334, 0.0
  %v1336 = vld [vmem:[%s1 + $0x100] sm:$0xff]
  %v1337 = vld [vmem:[%s1 + $0x108] sm:$0xff]
  %v1338 = vld [vmem:[%s1 + $0x110] sm:$0x1]
  %v1339 = vlaneseq
  %v1340 = vshrl.u32 %v1339, 7
  %v1341 = vsub.s32 0, %v1340
  %v1342 = vrot.slane %v1338, %v1341
  %v1344 = vsel %vm1228, %v1335, 0
  %1346 = vmatprep.subr.mxu0 0.0
  %1347 = vmatpush1.msra.mxu0 %v1336
  %1348 = vmatprep.subr.mxu0 0.0
  %1349 = vmatpush1.msra.mxu0 %v1337
  %1350 = vmatprep.subr.mxu0 0.0
  %1351 = vmatpush1.msra.mxu0 0.0
  %1352 = vmatprep.subr.mxu0 0.0
  %1353 = vmatpush1.msra.mxu0 0.0
  %1354 = vmatprep.subr.mxu0 0.0
  %1355 = vmatpush1.msra.mxu0 0.0
  %1356 = vmatprep.subr.mxu0 0.0
  %1357 = vmatpush1.msra.mxu0 0.0
  %1358 = vmatprep.subr.mxu0 0.0
  %1359 = vmatpush1.msra.mxu0 0.0
  %1360 = vmatprep.subr.mxu0 0.0
  %1361 = vmatpush1.msra.mxu0 0.0
  %1362 = vmatprep.subr.mxu0 0.0
  %1363 = vmatpush1.msra.mxu0 0.0
  %1364 = vmatprep.subr.mxu0 0.0
  %1365 = vmatpush1.msra.mxu0 0.0
  %1366 = vmatprep.subr.mxu0 0.0
  %1367 = vmatpush1.msra.mxu0 0.0
  %1368 = vmatprep.subr.mxu0 0.0
  %1369 = vmatpush1.msra.mxu0 0.0
  %1370 = vmatprep.subr.mxu0 0.0
  %1371 = vmatpush1.msra.mxu0 0.0
  %1372 = vmatprep.subr.mxu0 0.0
  %1373 = vmatpush1.msra.mxu0 0.0
  %1374 = vmatprep.subr.mxu0 0.0
  %1375 = vmatpush1.msra.mxu0 0.0
  %1376 = vmatprep.subr.mxu0 0.0
  %1377 = vmatpush1.msra.mxu0 0.0
  %1378 = vmatprep.subr.mxu0 0.0
  %1379 = vmatpush1.msra.mxu0 0.0
  %1380 = vmatprep.subr.mxu0 0.0
  %1381 = vmatpush1.msra.mxu0 0.0
  %1382 = vmatprep.subr.mxu0 0.0
  %1383 = vmatpush1.msra.mxu0 0.0
  %1384 = vmatprep.subr.mxu0 0.0
  %1385 = vmatpush1.msra.mxu0 0.0
  %1386 = vmatprep.subr.mxu0 0.0
  %1387 = vmatpush1.msra.mxu0 0.0
  %1388 = vmatprep.subr.mxu0 0.0
  %1389 = vmatpush1.msra.mxu0 0.0
  %1390 = vmatprep.subr.mxu0 0.0
  %1391 = vmatpush1.msra.mxu0 0.0
  %1392 = vmatprep.subr.mxu0 0.0
  %1393 = vmatpush1.msra.mxu0 0.0
  %1394 = vmatprep.subr.mxu0 0.0
  %1395 = vmatpush1.msra.mxu0 0.0
  %1396 = vmatprep.subr.mxu0 0.0
  %1397 = vmatpush1.msra.mxu0 0.0
  %1398 = vmatprep.subr.mxu0 0.0
  %1399 = vmatpush1.msra.mxu0 0.0
  %1400 = vmatprep.subr.mxu0 0.0
  %1401 = vmatpush1.msra.mxu0 0.0
  %1402 = vmatprep.subr.mxu0 0.0
  %1403 = vmatpush1.msra.mxu0 0.0
  %1404 = vmatprep.subr.mxu0 0.0
  %1405 = vmatpush1.msra.mxu0 0.0
  %1406 = vmatprep.subr.mxu0 0.0
  %1407 = vmatpush1.msra.mxu0 0.0
  %1408 = vmatprep.subr.mxu0 0.0
  %1409 = vmatpush1.msra.mxu0 0.0
  %1410 = vmatprep.mubr.f32.mxu0 0.0
  %1411 = vmatmul.mubr.f32.gmra.mrb[0].mxu0 %v1344
  %v1412 = vpop.f32.mrb[0].mxu0
  %v1413 = vadd.f32 %v1342, %v1412
  %v1414 = vpop.f32.mrb[0].mxu0
  %1415 = vdwg.mxu0
  %1417 = vrot.lane.b32.xlu0 %v1413, 16
  %v1418 = vpop.permute.xlu0 %1417
  %v1420 = vsel %vm1228, %v1220, %v1418
  %v1421 = vsel %vm727, %v1420, %v950
  %vm1422 = vcmask 343040
  %v1423 = vsel %vm1422, %v1421, 0.0
  %1424 = vst [vmem:[%s2] sm:$0x3] %v1423
  // Predicated region
  $region10: #{forward.1} parent=0 // pred_check
    _
  $region11: #{forward.1} parent=0 // pred_check_branch
    %1426 = sbr.rel (0) target = $region13
  $region12: #{forward.1} parent=0 // pred_region
    _
  $region13: #{forward.1} parent=0 // pred_fallthru
    _
  // Predicated region
  $region14: #{forward.1} parent=0 // pred_check
    _
  $region15: #{forward.1} parent=0 // pred_check_branch
    %1428 = sbr.rel (0) target = $region17
  $region16: #{forward.1} parent=0 // pred_region
    _
  $region17: #{forward.1} parent=0 // pred_fallthru
    _

</llo_original>
